<compile_context>
chip_gen: v7x
topology: tpu7x:2x2x1
jax: 0.10.0
libtpu: 0.0.40
codegen_flags: <defaults>
</compile_context>

<pallas_src>
import functools

import jax
import jax.numpy as jnp
from jax import lax
from jax.experimental import pallas as pl
from jax.experimental.pallas import tpu as pltpu

BN_EPS = 1e-5
IN_FEATURES = 28 * 28          # 784
H1, H2, H3, NUM_CLASSES = 58, 120, 84, 10
PAD = 128                      # lane-dense padded feature width


def _round_up(x, m):
    return ((x + m - 1) // m) * m


def _silu(x, approx):
    # sigmoid = 1 / (1 + exp(-x)); exp (and approx reciprocal) run on the EUP
    # slot, keeping the VPU free.  approx=False in the f32-check configuration.
    return x * pl.reciprocal(1.0 + jnp.exp(-x), approx=approx)


# ---------------- pass 1: h1 = x @ W1, accumulate sum / sumsq of h1 ----------
def _stats1_kernel(x_ref, w1_ref, h1_ref, s_ref, ss_ref):
    @pl.when(pl.program_id(0) == 0)
    def _():
        s_ref[...] = jnp.zeros_like(s_ref)
        ss_ref[...] = jnp.zeros_like(ss_ref)

    # Linear bias b1 is intentionally dropped: exactly cancelled by the
    # mean subtraction of the training-mode BatchNorm that follows.
    h1 = jnp.dot(x_ref[...], w1_ref[...], preferred_element_type=jnp.float32)
    h1_ref[...] = h1
    # zero-padded batch rows contribute exactly 0 (no bias) -> no mask needed.
    s_ref[...] += jnp.sum(h1, axis=0, keepdims=True)
    ss_ref[...] += jnp.sum(h1 * h1, axis=0, keepdims=True)


# ---------------- pass 2: BN1 + SiLU + h2 = a1 @ W2, BN2 statistics ----------
def _stats2_kernel(h1_ref, s1_ref, ss1_ref, g1_ref, be1_ref, w2_ref,
                   h2_ref, s_ref, ss_ref,
                   *, true_b, block_b, matmul_dtype, approx):
    i = pl.program_id(0)

    @pl.when(i == 0)
    def _():
        s_ref[...] = jnp.zeros_like(s_ref)
        ss_ref[...] = jnp.zeros_like(ss_ref)

    inv_b = jnp.float32(1.0 / true_b)
    mu1 = s1_ref[...] * inv_b
    var1 = jnp.maximum(ss1_ref[...] * inv_b - mu1 * mu1, 0.0)
    rstd1 = lax.rsqrt(var1 + BN_EPS)

    a1 = (h1_ref[...] - mu1) * (rstd1 * g1_ref[...]) + be1_ref[...]
    a1 = _silu(a1, approx)
    # Linear bias b2 dropped: cancelled by the following training-mode BN.
    h2 = jnp.dot(a1.astype(matmul_dtype), w2_ref[...],
                 preferred_element_type=jnp.float32)
    h2_ref[...] = h2

    # padded batch rows would pollute BN2 statistics -> mask them out.
    row = i * block_b + lax.broadcasted_iota(jnp.int32, h2.shape, 0)
    valid = (row < true_b).astype(jnp.float32)
    h2m = h2 * valid
    s_ref[...] += jnp.sum(h2m, axis=0, keepdims=True)
    ss_ref[...] += jnp.sum(h2m * h2m, axis=0, keepdims=True)


# ------- pass 3: BN2 -> FC_1 -> SiLU -> FC_2 -> SiLU -> LogSoftmax -----------
def _final_kernel(h2_ref, s2_ref, ss2_ref, g2_ref, be2_ref,
                  w3_ref, b3_ref, w4_ref, b4_ref, o_ref,
                  *, true_b, matmul_dtype, approx):
    inv_b = jnp.float32(1.0 / true_b)
    mu2 = s2_ref[...] * inv_b
    var2 = jnp.maximum(ss2_ref[...] * inv_b - mu2 * mu2, 0.0)
    rstd2 = lax.rsqrt(var2 + BN_EPS)

    a2 = (h2_ref[...] - mu2) * (rstd2 * g2_ref[...]) + be2_ref[...]

    a3 = _silu(jnp.dot(a2.astype(matmul_dtype), w3_ref[...],
                       preferred_element_type=jnp.float32) + b3_ref[...], approx)
    logits = _silu(jnp.dot(a3.astype(matmul_dtype), w4_ref[...],
                           preferred_element_type=jnp.float32) + b4_ref[...],
                   approx)

    # mask the lane padding (columns >= NUM_CLASSES) out of the softmax
    col = lax.broadcasted_iota(jnp.int32, logits.shape, 1)
    logits = jnp.where(col < NUM_CLASSES, logits, jnp.float32(-1e30))

    m = jnp.max(logits, axis=-1, keepdims=True)
    z = logits - m
    lse = jnp.log(jnp.sum(jnp.exp(z), axis=-1, keepdims=True))
    o_ref[...] = z - lse


# ------------------------------ parameters -----------------------------------
def init_params(key):
    """PyTorch-like uniform fan-in init.  Weights stored (in, out)."""
    dims = [(IN_FEATURES, H1), (H1, H2), (H2, H3), (H3, NUM_CLASSES)]
    params = {}
    keys = jax.random.split(key, 2 * len(dims))
    for i, (fin, fout) in enumerate(dims):
        bound = 1.0 / float(fin) ** 0.5
        params[f"w{i + 1}"] = jax.random.uniform(
            keys[2 * i], (fin, fout), jnp.float32, -bound, bound)
        params[f"b{i + 1}"] = jax.random.uniform(
            keys[2 * i + 1], (1, fout), jnp.float32, -bound, bound)
    params["g1"] = jnp.ones((1, H1), jnp.float32)
    params["be1"] = jnp.zeros((1, H1), jnp.float32)
    params["g2"] = jnp.ones((1, H2), jnp.float32)
    params["be2"] = jnp.zeros((1, H2), jnp.float32)
    return params


def _pad2(a, rows, cols):
    return jnp.pad(a, ((0, rows - a.shape[0]), (0, cols - a.shape[1])))


def _pad_cols(a, cols):
    return jnp.pad(a, ((0, 0), (0, cols - a.shape[1])))


# ------------------------------ wrapper ---------------------------------------
@functools.partial(jax.jit, static_argnames=("matmul_dtype", "block_b"))
def custom_mlp_forward(x, params, *, matmul_dtype=jnp.bfloat16, block_b=1024):
    B = x.shape[0]
    approx = (matmul_dtype != jnp.float32)   # exact sigmoid in f32 config
    f32 = jnp.float32

    # glue: NCHW (B,1,28,28) -> (B,784); pad batch to a multiple of the tile
    x2d = x.reshape(B, IN_FEATURES).astype(f32)
    tb = min(block_b, _round_up(B, 8))       # batch tile (multiple of 8)
    bp = _round_up(B, tb)                    # padded batch
    x2d = jnp.pad(x2d, ((0, bp - B), (0, 0))).astype(matmul_dtype)
    n_tiles = bp // tb

    # pad every feature dim to 128 lanes (lane-dense layouts everywhere)
    w1 = _pad2(params["w1"], IN_FEATURES, PAD).astype(matmul_dtype)
    w2 = _pad2(params["w2"], PAD, PAD).astype(matmul_dtype)
    w3 = _pad2(params["w3"], PAD, PAD).astype(matmul_dtype)
    w4 = _pad2(params["w4"], PAD, PAD).astype(matmul_dtype)
    b3 = _pad_cols(params["b3"], PAD)
    b4 = _pad_cols(params["b4"], PAD)
    g1 = _pad_cols(params["g1"], PAD)
    be1 = _pad_cols(params["be1"], PAD)
    g2 = _pad_cols(params["g2"], PAD)
    be2 = _pad_cols(params["be2"], PAD)
    # b1 / b2 are NOT used: Linear bias + training-mode BN cancels exactly.

    row_spec = lambda shp: pl.BlockSpec(shp, lambda i: (i, 0))   # batch-tiled
    res_spec = lambda shp: pl.BlockSpec(shp, lambda i: (0, 0))   # stays resident

    # ---- pass 1 -------------------------------------------------------------
    h1, s1, ss1 = pl.pallas_call(
        _stats1_kernel,
        grid=(n_tiles,),
        in_specs=[row_spec((tb, IN_FEATURES)), res_spec((IN_FEATURES, PAD))],
        out_specs=[row_spec((tb, PAD)), res_spec((1, PAD)), res_spec((1, PAD))],
        out_shape=[jax.ShapeDtypeStruct((bp, PAD), f32),
                   jax.ShapeDtypeStruct((1, PAD), f32),
                   jax.ShapeDtypeStruct((1, PAD), f32)],
        compiler_params=pltpu.CompilerParams(dimension_semantics=("arbitrary",)),
        cost_estimate=pl.CostEstimate(
            flops=2 * bp * IN_FEATURES * PAD + 4 * bp * PAD,
            transcendentals=0,
            bytes_accessed=(x2d.size * x2d.dtype.itemsize
                            + w1.size * w1.dtype.itemsize
                            + bp * PAD * 4 + 2 * PAD * 4)),
    )(x2d, w1)

    # ---- pass 2 -------------------------------------------------------------
    k2 = functools.partial(_stats2_kernel, true_b=B, block_b=tb,
                           matmul_dtype=matmul_dtype, approx=approx)
    h2, s2, ss2 = pl.pallas_call(
        k2,
        grid=(n_tiles,),
        in_specs=[row_spec((tb, PAD)),
                  res_spec((1, PAD)), res_spec((1, PAD)),
                  res_spec((1, PAD)), res_spec((1, PAD)),
                  res_spec((PAD, PAD))],
        out_specs=[row_spec((tb, PAD)), res_spec((1, PAD)), res_spec((1, PAD))],
        out_shape=[jax.ShapeDtypeStruct((bp, PAD), f32),
                   jax.ShapeDtypeStruct((1, PAD), f32),
                   jax.ShapeDtypeStruct((1, PAD), f32)],
        compiler_params=pltpu.CompilerParams(dimension_semantics=("arbitrary",)),
        cost_estimate=pl.CostEstimate(
            flops=2 * bp * PAD * PAD + 16 * bp * PAD,
            transcendentals=bp * PAD,
            bytes_accessed=2 * bp * PAD * 4 + w2.size * w2.dtype.itemsize),
    )(h1, s1, ss1, g1, be1, w2)

    # ---- pass 3 (purely parallel over batch tiles) --------------------------
    k3 = functools.partial(_final_kernel, true_b=B,
                           matmul_dtype=matmul_dtype, approx=approx)
    out = pl.pallas_call(
        k3,
        grid=(n_tiles,),
        in_specs=[row_spec((tb, PAD)),
                  res_spec((1, PAD)), res_spec((1, PAD)),
                  res_spec((1, PAD)), res_spec((1, PAD)),
                  res_spec((PAD, PAD)), res_spec((1, PAD)),
                  res_spec((PAD, PAD)), res_spec((1, PAD))],
        out_specs=row_spec((tb, PAD)),
        out_shape=jax.ShapeDtypeStruct((bp, PAD), f32),
        compiler_params=pltpu.CompilerParams(dimension_semantics=("parallel",)),
        cost_estimate=pl.CostEstimate(
            flops=4 * bp * PAD * PAD + 24 * bp * PAD,
            transcendentals=3 * bp * PAD,
            bytes_accessed=(2 * bp * PAD * 4
                            + (w3.size + w4.size) * w3.dtype.itemsize)),
    )(h2, s2, ss2, g2, be2, w3, b3, w4, b4)

    # glue: strip batch padding and lane padding
    return out[:B, :NUM_CLASSES]


# ------------------------------ reference -------------------------------------
def reference_forward(x, params):
    """Pure-JAX f32 reference (includes b1/b2 to prove the BN cancellation)."""
    B = x.shape[0]
    h = x.reshape(B, IN_FEATURES).astype(jnp.float32)

    def bn(v, g, b):
        mu = jnp.mean(v, axis=0, keepdims=True)
        var = jnp.mean((v - mu) ** 2, axis=0, keepdims=True)
        return (v - mu) / jnp.sqrt(var + BN_EPS) * g + b

    silu = lambda v: v * jax.nn.sigmoid(v)
    h = bn(h @ params["w1"] + params["b1"], params["g1"], params["be1"])
    h = silu(h)
    h = bn(h @ params["w2"] + params["b2"], params["g2"], params["be2"])
    h = silu(h @ params["w3"] + params["b3"])
    h = silu(h @ params["w4"] + params["b4"])
    return jax.nn.log_softmax(h, axis=-1)


if __name__ == "__main__":
    key = jax.random.PRNGKey(0)
    k_x, k_p = jax.random.split(key)

    # Small MNIST-like batch: (N, C, H, W) = (8, 1, 28, 28)
    x = jax.random.normal(k_x, (8, 1, 28, 28), jnp.float32)
    params = init_params(k_p)
    ref = reference_forward(x, params)

    # f32 MXU path: tight numerical check against the pure-JAX reference.
    out_f32 = jax.block_until_ready(
        custom_mlp_forward(x, params, matmul_dtype=jnp.float32, block_b=1024))
    assert out_f32.shape == (8, NUM_CLASSES)
    assert jnp.allclose(out_f32, ref, atol=1e-3, rtol=1e-3), "f32 mismatch"
    assert jnp.allclose(jnp.sum(jnp.exp(out_f32), axis=-1), 1.0, atol=1e-4)

    # bf16 MXU path (default fast path on v6e/v7x): loose tolerance.
    out_bf16 = jax.block_until_ready(
        custom_mlp_forward(x, params, matmul_dtype=jnp.bfloat16, block_b=1024))
    assert out_bf16.shape == (8, NUM_CLASSES)
    assert jnp.allclose(out_bf16, ref, atol=5e-2, rtol=5e-2), "bf16 mismatch"
    assert jnp.allclose(jnp.sum(jnp.exp(out_bf16), axis=-1), 1.0, atol=1e-3)

    print("KERNEL_OK")
</pallas_src>

<mosaic_0001>
module attributes {stable_mosaic.version = 11 : i64} {
  func.func @_stats1_kernel(%arg0: i32, %arg1: memref<8x784xf32, #tpu.memory_space<vmem>>, %arg2: memref<784x128xf32, #tpu.memory_space<vmem>>, %arg3: memref<8x128xf32, #tpu.memory_space<vmem>>, %arg4: memref<1x128xf32, #tpu.memory_space<vmem>>, %arg5: memref<1x128xf32, #tpu.memory_space<vmem>>) attributes {dimension_semantics = [#tpu.dimension_semantics<arbitrary>], iteration_bounds = array<i64: 1>, scalar_prefetch = 0 : i64, scratch_operands = 0 : i64, tpu.core_type = #tpu.core_type<tc>, window_params = [{transform_indices = @transform_0, window_bounds = array<i64: 8, 784>}, {pipeline_mode = #tpu.pipeline_mode<synchronous>, transform_indices = @transform_1, window_bounds = array<i64: 784, 128>}, {transform_indices = @transform_2, window_bounds = array<i64: 8, 128>}, {pipeline_mode = #tpu.pipeline_mode<synchronous>, transform_indices = @transform_3, window_bounds = array<i64: 1, 128>}, {pipeline_mode = #tpu.pipeline_mode<synchronous>, transform_indices = @transform_4, window_bounds = array<i64: 1, 128>}]} {
    %c0_i32 = arith.constant 0 : i32
    %0 = arith.cmpi eq, %arg0, %c0_i32 : i32
    %1 = arith.extui %0 : i1 to i32
    %c0_i32_0 = arith.constant 0 : i32
    %2 = arith.cmpi ne, %1, %c0_i32_0 : i32
    scf.if %2 {
      %cst_16 = arith.constant 0.000000e+00 : f32
      %18 = vector.broadcast %cst_16 : f32 to vector<1x128xf32>
      %c0_17 = arith.constant 0 : index
      %c0_18 = arith.constant 0 : index
      %19 = vector.load %arg4[%c0_17, %c0_18] : memref<1x128xf32, #tpu.memory_space<vmem>>, vector<1x128xf32>
      tpu.vector_store %arg4[%c0_17, %c0_18], %18 {strides = array<i32>} : memref<1x128xf32, #tpu.memory_space<vmem>>, vector<1x128xf32>,
      %cst_19 = arith.constant 0.000000e+00 : f32
      %20 = vector.broadcast %cst_19 : f32 to vector<1x128xf32>
      %c0_20 = arith.constant 0 : index
      %c0_21 = arith.constant 0 : index
      %21 = vector.load %arg5[%c0_20, %c0_21] : memref<1x128xf32, #tpu.memory_space<vmem>>, vector<1x128xf32>
      tpu.vector_store %arg5[%c0_20, %c0_21], %20 {strides = array<i32>} : memref<1x128xf32, #tpu.memory_space<vmem>>, vector<1x128xf32>,
    } else {
    }
    %c0 = arith.constant 0 : index
    %c0_1 = arith.constant 0 : index
    %3 = vector.load %arg1[%c0, %c0_1] : memref<8x784xf32, #tpu.memory_space<vmem>>, vector<8x784xf32>
    %c0_2 = arith.constant 0 : index
    %c0_3 = arith.constant 0 : index
    %4 = vector.load %arg2[%c0_2, %c0_3] : memref<784x128xf32, #tpu.memory_space<vmem>>, vector<784x128xf32>
    %cst = arith.constant dense<0.000000e+00> : vector<8x128xf32>
    %5 = tpu.matmul %3, %4, %cst {dimension_numbers = #tpu.dot_dimension_numbers<[1], [0], [0], [1], [0, 0, 1, 1], [], []>} : vector<8x784xf32>, vector<784x128xf32>, vector<8x128xf32> -> vector<8x128xf32>
    %c0_4 = arith.constant 0 : index
    %c0_5 = arith.constant 0 : index
    %6 = vector.load %arg3[%c0_4, %c0_5] : memref<8x128xf32, #tpu.memory_space<vmem>>, vector<8x128xf32>
    tpu.vector_store %arg3[%c0_4, %c0_5], %5 {strides = array<i32>} : memref<8x128xf32, #tpu.memory_space<vmem>>, vector<8x128xf32>,
    %c0_6 = arith.constant 0 : index
    %c0_7 = arith.constant 0 : index
    %7 = vector.load %arg4[%c0_6, %c0_7] : memref<1x128xf32, #tpu.memory_space<vmem>>, vector<1x128xf32>
    %cst_8 = arith.constant dense<0.000000e+00> : vector<128xf32>
    %8 = vector.multi_reduction <add>, %5, %cst_8 [0] : vector<8x128xf32> to vector<128xf32>
    %9 = vector.shape_cast %8 : vector<128xf32> to vector<1x128xf32>
    %10 = arith.addf %7, %9 : vector<1x128xf32>
    %c0_9 = arith.constant 0 : index
    %c0_10 = arith.constant 0 : index
    %11 = vector.load %arg4[%c0_9, %c0_10] : memref<1x128xf32, #tpu.memory_space<vmem>>, vector<1x128xf32>
    tpu.vector_store %arg4[%c0_9, %c0_10], %10 {strides = array<i32>} : memref<1x128xf32, #tpu.memory_space<vmem>>, vector<1x128xf32>,
    %c0_11 = arith.constant 0 : index
    %c0_12 = arith.constant 0 : index
    %12 = vector.load %arg5[%c0_11, %c0_12] : memref<1x128xf32, #tpu.memory_space<vmem>>, vector<1x128xf32>
    %13 = arith.mulf %5, %5 : vector<8x128xf32>
    %cst_13 = arith.constant dense<0.000000e+00> : vector<128xf32>
    %14 = vector.multi_reduction <add>, %13, %cst_13 [0] : vector<8x128xf32> to vector<128xf32>
    %15 = vector.shape_cast %14 : vector<128xf32> to vector<1x128xf32>
    %16 = arith.addf %12, %15 : vector<1x128xf32>
    %c0_14 = arith.constant 0 : index
    %c0_15 = arith.constant 0 : index
    %17 = vector.load %arg5[%c0_14, %c0_15] : memref<1x128xf32, #tpu.memory_space<vmem>>, vector<1x128xf32>
    tpu.vector_store %arg5[%c0_14, %c0_15], %16 {strides = array<i32>} : memref<1x128xf32, #tpu.memory_space<vmem>>, vector<1x128xf32>,
    return
  }
  func.func @transform_0(%arg0: i32) -> (i32, i32) {
    %c0_i32 = arith.constant 0 : i32
    %c0_i32_0 = arith.constant 0 : i32
    return %arg0, %c0_i32 : i32, i32
  }
  func.func @transform_1(%arg0: i32) -> (i32, i32) {
    %c0_i32 = arith.constant 0 : i32
    %c0_i32_0 = arith.constant 0 : i32
    %c0_i32_1 = arith.constant 0 : i32
    return %c0_i32, %c0_i32_0 : i32, i32
  }
  func.func @transform_2(%arg0: i32) -> (i32, i32) {
    %c0_i32 = arith.constant 0 : i32
    %c0_i32_0 = arith.constant 0 : i32
    return %arg0, %c0_i32 : i32, i32
  }
  func.func @transform_3(%arg0: i32) -> (i32, i32) {
    %c0_i32 = arith.constant 0 : i32
    %c0_i32_0 = arith.constant 0 : i32
    %c0_i32_1 = arith.constant 0 : i32
    return %c0_i32, %c0_i32_0 : i32, i32
  }
  func.func @transform_4(%arg0: i32) -> (i32, i32) {
    %c0_i32 = arith.constant 0 : i32
    %c0_i32_0 = arith.constant 0 : i32
    %c0_i32_1 = arith.constant 0 : i32
    return %c0_i32, %c0_i32_0 : i32, i32
  }
}

module attributes {stable_mosaic.version = 11 : i64} {
  func.func @_stats2_kernel(%arg0: i32, %arg1: memref<8x128xf32, #tpu.memory_space<vmem>>, %arg2: memref<1x128xf32, #tpu.memory_space<vmem>>, %arg3: memref<1x128xf32, #tpu.memory_space<vmem>>, %arg4: memref<1x128xf32, #tpu.memory_space<vmem>>, %arg5: memref<1x128xf32, #tpu.memory_space<vmem>>, %arg6: memref<128x128xf32, #tpu.memory_space<vmem>>, %arg7: memref<8x128xf32, #tpu.memory_space<vmem>>, %arg8: memref<1x128xf32, #tpu.memory_space<vmem>>, %arg9: memref<1x128xf32, #tpu.memory_space<vmem>>) attributes {dimension_semantics = [#tpu.dimension_semantics<arbitrary>], iteration_bounds = array<i64: 1>, scalar_prefetch = 0 : i64, scratch_operands = 0 : i64, tpu.core_type = #tpu.core_type<tc>, window_params = [{transform_indices = @transform_0, window_bounds = array<i64: 8, 128>}, {pipeline_mode = #tpu.pipeline_mode<synchronous>, transform_indices = @transform_1, window_bounds = array<i64: 1, 128>}, {pipeline_mode = #tpu.pipeline_mode<synchronous>, transform_indices = @transform_2, window_bounds = array<i64: 1, 128>}, {pipeline_mode = #tpu.pipeline_mode<synchronous>, transform_indices = @transform_3, window_bounds = array<i64: 1, 128>}, {pipeline_mode = #tpu.pipeline_mode<synchronous>, transform_indices = @transform_4, window_bounds = array<i64: 1, 128>}, {pipeline_mode = #tpu.pipeline_mode<synchronous>, transform_indices = @transform_5, window_bounds = array<i64: 128, 128>}, {transform_indices = @transform_6, window_bounds = array<i64: 8, 128>}, {pipeline_mode = #tpu.pipeline_mode<synchronous>, transform_indices = @transform_7, window_bounds = array<i64: 1, 128>}, {pipeline_mode = #tpu.pipeline_mode<synchronous>, transform_indices = @transform_8, window_bounds = array<i64: 1, 128>}]} {
    %c0_i32 = arith.constant 0 : i32
    %0 = arith.cmpi eq, %arg0, %c0_i32 : i32
    %1 = arith.extui %0 : i1 to i32
    %c0_i32_0 = arith.constant 0 : i32
    %2 = arith.cmpi ne, %1, %c0_i32_0 : i32
    scf.if %2 {
      %cst_31 = arith.constant 0.000000e+00 : f32
      %56 = vector.broadcast %cst_31 : f32 to vector<1x128xf32>
      %c0_32 = arith.constant 0 : index
      %c0_33 = arith.constant 0 : index
      %57 = vector.load %arg8[%c0_32, %c0_33] : memref<1x128xf32, #tpu.memory_space<vmem>>, vector<1x128xf32>
      tpu.vector_store %arg8[%c0_32, %c0_33], %56 {strides = array<i32>} : memref<1x128xf32, #tpu.memory_space<vmem>>, vector<1x128xf32>,
      %cst_34 = arith.constant 0.000000e+00 : f32
      %58 = vector.broadcast %cst_34 : f32 to vector<1x128xf32>
      %c0_35 = arith.constant 0 : index
      %c0_36 = arith.constant 0 : index
      %59 = vector.load %arg9[%c0_35, %c0_36] : memref<1x128xf32, #tpu.memory_space<vmem>>, vector<1x128xf32>
      tpu.vector_store %arg9[%c0_35, %c0_36], %58 {strides = array<i32>} : memref<1x128xf32, #tpu.memory_space<vmem>>, vector<1x128xf32>,
    } else {
    }
    %c0 = arith.constant 0 : index
    %c0_1 = arith.constant 0 : index
    %3 = vector.load %arg2[%c0, %c0_1] : memref<1x128xf32, #tpu.memory_space<vmem>>, vector<1x128xf32>
    %cst = arith.constant 1.250000e-01 : f32
    %4 = vector.broadcast %cst : f32 to vector<1x128xf32>
    %5 = arith.mulf %3, %4 : vector<1x128xf32>
    %c0_2 = arith.constant 0 : index
    %c0_3 = arith.constant 0 : index
    %6 = vector.load %arg3[%c0_2, %c0_3] : memref<1x128xf32, #tpu.memory_space<vmem>>, vector<1x128xf32>
    %cst_4 = arith.constant 1.250000e-01 : f32
    %7 = vector.broadcast %cst_4 : f32 to vector<1x128xf32>
    %8 = arith.mulf %6, %7 : vector<1x128xf32>
    %9 = arith.mulf %5, %5 : vector<1x128xf32>
    %10 = arith.subf %8, %9 : vector<1x128xf32>
    %cst_5 = arith.constant 0.000000e+00 : f32
    %11 = vector.broadcast %cst_5 : f32 to vector<1x128xf32>
    %12 = arith.maximumf %10, %11 : vector<1x128xf32>
    %cst_6 = arith.constant 9.99999974E-6 : f32
    %13 = vector.broadcast %cst_6 : f32 to vector<1x128xf32>
    %14 = arith.addf %12, %13 : vector<1x128xf32>
    %15 = math.rsqrt %14 : vector<1x128xf32>
    %c0_7 = arith.constant 0 : index
    %c0_8 = arith.constant 0 : index
    %16 = vector.load %arg1[%c0_7, %c0_8] : memref<8x128xf32, #tpu.memory_space<vmem>>, vector<8x128xf32>
    %17 = vector.broadcast %5 : vector<1x128xf32> to vector<8x128xf32>
    %18 = arith.subf %16, %17 : vector<8x128xf32>
    %c0_9 = arith.constant 0 : index
    %c0_10 = arith.constant 0 : index
    %19 = vector.load %arg4[%c0_9, %c0_10] : memref<1x128xf32, #tpu.memory_space<vmem>>, vector<1x128xf32>
    %20 = arith.mulf %15, %19 : vector<1x128xf32>
    %21 = vector.broadcast %20 : vector<1x128xf32> to vector<8x128xf32>
    %22 = arith.mulf %18, %21 : vector<8x128xf32>
    %c0_11 = arith.constant 0 : index
    %c0_12 = arith.constant 0 : index
    %23 = vector.load %arg5[%c0_11, %c0_12] : memref<1x128xf32, #tpu.memory_space<vmem>>, vector<1x128xf32>
    %24 = vector.broadcast %23 : vector<1x128xf32> to vector<8x128xf32>
    %25 = arith.addf %22, %24 : vector<8x128xf32>
    %cst_13 = arith.constant 0.000000e+00 : f32
    %26 = vector.broadcast %cst_13 : f32 to vector<8x128xf32>
    %27 = arith.subf %26, %25 : vector<8x128xf32>
    %28 = math.exp %27 : vector<8x128xf32>
    %cst_14 = arith.constant 1.000000e+00 : f32
    %29 = vector.broadcast %cst_14 : f32 to vector<8x128xf32>
    %30 = arith.addf %29, %28 : vector<8x128xf32>
    %31 = tpu.reciprocal %30 : vector<8x128xf32> -> vector<8x128xf32>
    %32 = arith.mulf %25, %31 : vector<8x128xf32>
    %c0_15 = arith.constant 0 : index
    %c0_16 = arith.constant 0 : index
    %33 = vector.load %arg6[%c0_15, %c0_16] : memref<128x128xf32, #tpu.memory_space<vmem>>, vector<128x128xf32>
    %cst_17 = arith.constant dense<0.000000e+00> : vector<8x128xf32>
    %34 = tpu.matmul %32, %33, %cst_17 {dimension_numbers = #tpu.dot_dimension_numbers<[1], [0], [0], [1], [0, 0, 1, 1], [], []>} : vector<8x128xf32>, vector<128x128xf32>, vector<8x128xf32> -> vector<8x128xf32>
    %c0_18 = arith.constant 0 : index
    %c0_19 = arith.constant 0 : index
    %35 = vector.load %arg7[%c0_18, %c0_19] : memref<8x128xf32, #tpu.memory_space<vmem>>, vector<8x128xf32>
    tpu.vector_store %arg7[%c0_18, %c0_19], %34 {strides = array<i32>} : memref<8x128xf32, #tpu.memory_space<vmem>>, vector<8x128xf32>,
    %c8_i32 = arith.constant 8 : i32
    %36 = arith.muli %arg0, %c8_i32 : i32
    %37 = tpu.iota {dimensions = array<i32: 0>} : vector<8x128xi32>
    %38 = vector.broadcast %36 : i32 to vector<8x128xi32>
    %39 = arith.addi %38, %37 : vector<8x128xi32>
    %c8_i32_20 = arith.constant 8 : i32
    %40 = vector.broadcast %c8_i32_20 : i32 to vector<8x128xi32>
    %41 = arith.cmpi slt, %39, %40 : vector<8x128xi32>
    %42 = arith.extui %41 : vector<8x128xi1> to vector<8x128xi32>
    %43 = arith.sitofp %42 : vector<8x128xi32> to vector<8x128xf32>
    %44 = arith.mulf %34, %43 : vector<8x128xf32>
    %c0_21 = arith.constant 0 : index
    %c0_22 = arith.constant 0 : index
    %45 = vector.load %arg8[%c0_21, %c0_22] : memref<1x128xf32, #tpu.memory_space<vmem>>, vector<1x128xf32>
    %cst_23 = arith.constant dense<0.000000e+00> : vector<128xf32>
    %46 = vector.multi_reduction <add>, %44, %cst_23 [0] : vector<8x128xf32> to vector<128xf32>
    %47 = vector.shape_cast %46 : vector<128xf32> to vector<1x128xf32>
    %48 = arith.addf %45, %47 : vector<1x128xf32>
    %c0_24 = arith.constant 0 : index
    %c0_25 = arith.constant 0 : index
    %49 = vector.load %arg8[%c0_24, %c0_25] : memref<1x128xf32, #tpu.memory_space<vmem>>, vector<1x128xf32>
    tpu.vector_store %arg8[%c0_24, %c0_25], %48 {strides = array<i32>} : memref<1x128xf32, #tpu.memory_space<vmem>>, vector<1x128xf32>,
    %c0_26 = arith.constant 0 : index
    %c0_27 = arith.constant 0 : index
    %50 = vector.load %arg9[%c0_26, %c0_27] : memref<1x128xf32, #tpu.memory_space<vmem>>, vector<1x128xf32>
    %51 = arith.mulf %44, %44 : vector<8x128xf32>
    %cst_28 = arith.constant dense<0.000000e+00> : vector<128xf32>
    %52 = vector.multi_reduction <add>, %51, %cst_28 [0] : vector<8x128xf32> to vector<128xf32>
    %53 = vector.shape_cast %52 : vector<128xf32> to vector<1x128xf32>
    %54 = arith.addf %50, %53 : vector<1x128xf32>
    %c0_29 = arith.constant 0 : index
    %c0_30 = arith.constant 0 : index
    %55 = vector.load %arg9[%c0_29, %c0_30] : memref<1x128xf32, #tpu.memory_space<vmem>>, vector<1x128xf32>
    tpu.vector_store %arg9[%c0_29, %c0_30], %54 {strides = array<i32>} : memref<1x128xf32, #tpu.memory_space<vmem>>, vector<1x128xf32>,
    return
  }
  func.func @transform_0(%arg0: i32) -> (i32, i32) {
    %c0_i32 = arith.constant 0 : i32
    %c0_i32_0 = arith.constant 0 : i32
    return %arg0, %c0_i32 : i32, i32
  }
  func.func @transform_1(%arg0: i32) -> (i32, i32) {
    %c0_i32 = arith.constant 0 : i32
    %c0_i32_0 = arith.constant 0 : i32
    %c0_i32_1 = arith.constant 0 : i32
    return %c0_i32, %c0_i32_0 : i32, i32
  }
  func.func @transform_2(%arg0: i32) -> (i32, i32) {
    %c0_i32 = arith.constant 0 : i32
    %c0_i32_0 = arith.constant 0 : i32
    %c0_i32_1 = arith.constant 0 : i32
    return %c0_i32, %c0_i32_0 : i32, i32
  }
  func.func @transform_3(%arg0: i32) -> (i32, i32) {
    %c0_i32 = arith.constant 0 : i32
    %c0_i32_0 = arith.constant 0 : i32
    %c0_i32_1 = arith.constant 0 : i32
    return %c0_i32, %c0_i32_0 : i32, i32
  }
  func.func @transform_4(%arg0: i32) -> (i32, i32) {
    %c0_i32 = arith.constant 0 : i32
    %c0_i32_0 = arith.constant 0 : i32
    %c0_i32_1 = arith.constant 0 : i32
    return %c0_i32, %c0_i32_0 : i32, i32
  }
  func.func @transform_5(%arg0: i32) -> (i32, i32) {
    %c0_i32 = arith.constant 0 : i32
    %c0_i32_0 = arith.constant 0 : i32
    %c0_i32_1 = arith.constant 0 : i32
    return %c0_i32, %c0_i32_0 : i32, i32
  }
  func.func @transform_6(%arg0: i32) -> (i32, i32) {
    %c0_i32 = arith.constant 0 : i32
    %c0_i32_0 = arith.constant 0 : i32
    return %arg0, %c0_i32 : i32, i32
  }
  func.func @transform_7(%arg0: i32) -> (i32, i32) {
    %c0_i32 = arith.constant 0 : i32
    %c0_i32_0 = arith.constant 0 : i32
    %c0_i32_1 = arith.constant 0 : i32
    return %c0_i32, %c0_i32_0 : i32, i32
  }
  func.func @transform_8(%arg0: i32) -> (i32, i32) {
    %c0_i32 = arith.constant 0 : i32
    %c0_i32_0 = arith.constant 0 : i32
    %c0_i32_1 = arith.constant 0 : i32
    return %c0_i32, %c0_i32_0 : i32, i32
  }
}

module attributes {stable_mosaic.version = 11 : i64} {
  func.func @_final_kernel(%arg0: i32, %arg1: memref<8x128xf32, #tpu.memory_space<vmem>>, %arg2: memref<1x128xf32, #tpu.memory_space<vmem>>, %arg3: memref<1x128xf32, #tpu.memory_space<vmem>>, %arg4: memref<1x128xf32, #tpu.memory_space<vmem>>, %arg5: memref<1x128xf32, #tpu.memory_space<vmem>>, %arg6: memref<128x128xf32, #tpu.memory_space<vmem>>, %arg7: memref<1x128xf32, #tpu.memory_space<vmem>>, %arg8: memref<128x128xf32, #tpu.memory_space<vmem>>, %arg9: memref<1x128xf32, #tpu.memory_space<vmem>>, %arg10: memref<8x128xf32, #tpu.memory_space<vmem>>) attributes {dimension_semantics = [#tpu.dimension_semantics<parallel>], iteration_bounds = array<i64: 1>, scalar_prefetch = 0 : i64, scratch_operands = 0 : i64, tpu.core_type = #tpu.core_type<tc>, window_params = [{transform_indices = @transform_0, window_bounds = array<i64: 8, 128>}, {pipeline_mode = #tpu.pipeline_mode<synchronous>, transform_indices = @transform_1, window_bounds = array<i64: 1, 128>}, {pipeline_mode = #tpu.pipeline_mode<synchronous>, transform_indices = @transform_2, window_bounds = array<i64: 1, 128>}, {pipeline_mode = #tpu.pipeline_mode<synchronous>, transform_indices = @transform_3, window_bounds = array<i64: 1, 128>}, {pipeline_mode = #tpu.pipeline_mode<synchronous>, transform_indices = @transform_4, window_bounds = array<i64: 1, 128>}, {pipeline_mode = #tpu.pipeline_mode<synchronous>, transform_indices = @transform_5, window_bounds = array<i64: 128, 128>}, {pipeline_mode = #tpu.pipeline_mode<synchronous>, transform_indices = @transform_6, window_bounds = array<i64: 1, 128>}, {pipeline_mode = #tpu.pipeline_mode<synchronous>, transform_indices = @transform_7, window_bounds = array<i64: 128, 128>}, {pipeline_mode = #tpu.pipeline_mode<synchronous>, transform_indices = @transform_8, window_bounds = array<i64: 1, 128>}, {transform_indices = @transform_9, window_bounds = array<i64: 8, 128>}]} {
    %c0 = arith.constant 0 : index
    %c0_0 = arith.constant 0 : index
    %0 = vector.load %arg2[%c0, %c0_0] : memref<1x128xf32, #tpu.memory_space<vmem>>, vector<1x128xf32>
    %cst = arith.constant 1.250000e-01 : f32
    %1 = vector.broadcast %cst : f32 to vector<1x128xf32>
    %2 = arith.mulf %0, %1 : vector<1x128xf32>
    %c0_1 = arith.constant 0 : index
    %c0_2 = arith.constant 0 : index
    %3 = vector.load %arg3[%c0_1, %c0_2] : memref<1x128xf32, #tpu.memory_space<vmem>>, vector<1x128xf32>
    %cst_3 = arith.constant 1.250000e-01 : f32
    %4 = vector.broadcast %cst_3 : f32 to vector<1x128xf32>
    %5 = arith.mulf %3, %4 : vector<1x128xf32>
    %6 = arith.mulf %2, %2 : vector<1x128xf32>
    %7 = arith.subf %5, %6 : vector<1x128xf32>
    %cst_4 = arith.constant 0.000000e+00 : f32
    %8 = vector.broadcast %cst_4 : f32 to vector<1x128xf32>
    %9 = arith.maximumf %7, %8 : vector<1x128xf32>
    %cst_5 = arith.constant 9.99999974E-6 : f32
    %10 = vector.broadcast %cst_5 : f32 to vector<1x128xf32>
    %11 = arith.addf %9, %10 : vector<1x128xf32>
    %12 = math.rsqrt %11 : vector<1x128xf32>
    %c0_6 = arith.constant 0 : index
    %c0_7 = arith.constant 0 : index
    %13 = vector.load %arg1[%c0_6, %c0_7] : memref<8x128xf32, #tpu.memory_space<vmem>>, vector<8x128xf32>
    %14 = vector.broadcast %2 : vector<1x128xf32> to vector<8x128xf32>
    %15 = arith.subf %13, %14 : vector<8x128xf32>
    %c0_8 = arith.constant 0 : index
    %c0_9 = arith.constant 0 : index
    %16 = vector.load %arg4[%c0_8, %c0_9] : memref<1x128xf32, #tpu.memory_space<vmem>>, vector<1x128xf32>
    %17 = arith.mulf %12, %16 : vector<1x128xf32>
    %18 = vector.broadcast %17 : vector<1x128xf32> to vector<8x128xf32>
    %19 = arith.mulf %15, %18 : vector<8x128xf32>
    %c0_10 = arith.constant 0 : index
    %c0_11 = arith.constant 0 : index
    %20 = vector.load %arg5[%c0_10, %c0_11] : memref<1x128xf32, #tpu.memory_space<vmem>>, vector<1x128xf32>
    %21 = vector.broadcast %20 : vector<1x128xf32> to vector<8x128xf32>
    %22 = arith.addf %19, %21 : vector<8x128xf32>
    %c0_12 = arith.constant 0 : index
    %c0_13 = arith.constant 0 : index
    %23 = vector.load %arg6[%c0_12, %c0_13] : memref<128x128xf32, #tpu.memory_space<vmem>>, vector<128x128xf32>
    %cst_14 = arith.constant dense<0.000000e+00> : vector<8x128xf32>
    %24 = tpu.matmul %22, %23, %cst_14 {dimension_numbers = #tpu.dot_dimension_numbers<[1], [0], [0], [1], [0, 0, 1, 1], [], []>} : vector<8x128xf32>, vector<128x128xf32>, vector<8x128xf32> -> vector<8x128xf32>
    %c0_15 = arith.constant 0 : index
    %c0_16 = arith.constant 0 : index
    %25 = vector.load %arg7[%c0_15, %c0_16] : memref<1x128xf32, #tpu.memory_space<vmem>>, vector<1x128xf32>
    %26 = vector.broadcast %25 : vector<1x128xf32> to vector<8x128xf32>
    %27 = arith.addf %24, %26 : vector<8x128xf32>
    %cst_17 = arith.constant 0.000000e+00 : f32
    %28 = vector.broadcast %cst_17 : f32 to vector<8x128xf32>
    %29 = arith.subf %28, %27 : vector<8x128xf32>
    %30 = math.exp %29 : vector<8x128xf32>
    %cst_18 = arith.constant 1.000000e+00 : f32
    %31 = vector.broadcast %cst_18 : f32 to vector<8x128xf32>
    %32 = arith.addf %31, %30 : vector<8x128xf32>
    %33 = tpu.reciprocal %32 : vector<8x128xf32> -> vector<8x128xf32>
    %34 = arith.mulf %27, %33 : vector<8x128xf32>
    %c0_19 = arith.constant 0 : index
    %c0_20 = arith.constant 0 : index
    %35 = vector.load %arg8[%c0_19, %c0_20] : memref<128x128xf32, #tpu.memory_space<vmem>>, vector<128x128xf32>
    %cst_21 = arith.constant dense<0.000000e+00> : vector<8x128xf32>
    %36 = tpu.matmul %34, %35, %cst_21 {dimension_numbers = #tpu.dot_dimension_numbers<[1], [0], [0], [1], [0, 0, 1, 1], [], []>} : vector<8x128xf32>, vector<128x128xf32>, vector<8x128xf32> -> vector<8x128xf32>
    %c0_22 = arith.constant 0 : index
    %c0_23 = arith.constant 0 : index
    %37 = vector.load %arg9[%c0_22, %c0_23] : memref<1x128xf32, #tpu.memory_space<vmem>>, vector<1x128xf32>
    %38 = vector.broadcast %37 : vector<1x128xf32> to vector<8x128xf32>
    %39 = arith.addf %36, %38 : vector<8x128xf32>
    %cst_24 = arith.constant 0.000000e+00 : f32
    %40 = vector.broadcast %cst_24 : f32 to vector<8x128xf32>
    %41 = arith.subf %40, %39 : vector<8x128xf32>
    %42 = math.exp %41 : vector<8x128xf32>
    %cst_25 = arith.constant 1.000000e+00 : f32
    %43 = vector.broadcast %cst_25 : f32 to vector<8x128xf32>
    %44 = arith.addf %43, %42 : vector<8x128xf32>
    %45 = tpu.reciprocal %44 : vector<8x128xf32> -> vector<8x128xf32>
    %46 = arith.mulf %39, %45 : vector<8x128xf32>
    %47 = tpu.iota {dimensions = array<i32: 1>} : vector<8x128xi32>
    %c10_i32 = arith.constant 10 : i32
    %48 = vector.broadcast %c10_i32 : i32 to vector<8x128xi32>
    %49 = arith.cmpi slt, %47, %48 : vector<8x128xi32>
    %cst_26 = arith.constant -1.000000e+30 : f32
    %50 = vector.broadcast %cst_26 : f32 to vector<8x128xf32>
    %51 = arith.select %49, %46, %50 : vector<8x128xi1>, vector<8x128xf32>
    %cst_27 = arith.constant dense<0xFF800000> : vector<8xf32>
    %52 = vector.multi_reduction <maximumf>, %51, %cst_27 [1] : vector<8x128xf32> to vector<8xf32>
    %53 = vector.shape_cast %52 : vector<8xf32> to vector<8x1xf32>
    %54 = vector.broadcast %53 : vector<8x1xf32> to vector<8x128xf32>
    %55 = arith.subf %51, %54 : vector<8x128xf32>
    %56 = math.exp %55 : vector<8x128xf32>
    %cst_28 = arith.constant dense<0.000000e+00> : vector<8xf32>
    %57 = vector.multi_reduction <add>, %56, %cst_28 [1] : vector<8x128xf32> to vector<8xf32>
    %58 = vector.shape_cast %57 : vector<8xf32> to vector<8x1xf32>
    %59 = math.log %58 : vector<8x1xf32>
    %60 = vector.broadcast %59 : vector<8x1xf32> to vector<8x128xf32>
    %61 = arith.subf %55, %60 : vector<8x128xf32>
    %c0_29 = arith.constant 0 : index
    %c0_30 = arith.constant 0 : index
    %62 = vector.load %arg10[%c0_29, %c0_30] : memref<8x128xf32, #tpu.memory_space<vmem>>, vector<8x128xf32>
    tpu.vector_store %arg10[%c0_29, %c0_30], %61 {strides = array<i32>} : memref<8x128xf32, #tpu.memory_space<vmem>>, vector<8x128xf32>,
    return
  }
  func.func @transform_0(%arg0: i32) -> (i32, i32) {
    %c0_i32 = arith.constant 0 : i32
    %c0_i32_0 = arith.constant 0 : i32
    return %arg0, %c0_i32 : i32, i32
  }
  func.func @transform_1(%arg0: i32) -> (i32, i32) {
    %c0_i32 = arith.constant 0 : i32
    %c0_i32_0 = arith.constant 0 : i32
    %c0_i32_1 = arith.constant 0 : i32
    return %c0_i32, %c0_i32_0 : i32, i32
  }
  func.func @transform_2(%arg0: i32) -> (i32, i32) {
    %c0_i32 = arith.constant 0 : i32
    %c0_i32_0 = arith.constant 0 : i32
    %c0_i32_1 = arith.constant 0 : i32
    return %c0_i32, %c0_i32_0 : i32, i32
  }
  func.func @transform_3(%arg0: i32) -> (i32, i32) {
    %c0_i32 = arith.constant 0 : i32
    %c0_i32_0 = arith.constant 0 : i32
    %c0_i32_1 = arith.constant 0 : i32
    return %c0_i32, %c0_i32_0 : i32, i32
  }
  func.func @transform_4(%arg0: i32) -> (i32, i32) {
    %c0_i32 = arith.constant 0 : i32
    %c0_i32_0 = arith.constant 0 : i32
    %c0_i32_1 = arith.constant 0 : i32
    return %c0_i32, %c0_i32_0 : i32, i32
  }
  func.func @transform_5(%arg0: i32) -> (i32, i32) {
    %c0_i32 = arith.constant 0 : i32
    %c0_i32_0 = arith.constant 0 : i32
    %c0_i32_1 = arith.constant 0 : i32
    return %c0_i32, %c0_i32_0 : i32, i32
  }
  func.func @transform_6(%arg0: i32) -> (i32, i32) {
    %c0_i32 = arith.constant 0 : i32
    %c0_i32_0 = arith.constant 0 : i32
    %c0_i32_1 = arith.constant 0 : i32
    return %c0_i32, %c0_i32_0 : i32, i32
  }
  func.func @transform_7(%arg0: i32) -> (i32, i32) {
    %c0_i32 = arith.constant 0 : i32
    %c0_i32_0 = arith.constant 0 : i32
    %c0_i32_1 = arith.constant 0 : i32
    return %c0_i32, %c0_i32_0 : i32, i32
  }
  func.func @transform_8(%arg0: i32) -> (i32, i32) {
    %c0_i32 = arith.constant 0 : i32
    %c0_i32_0 = arith.constant 0 : i32
    %c0_i32_1 = arith.constant 0 : i32
    return %c0_i32, %c0_i32_0 : i32, i32
  }
  func.func @transform_9(%arg0: i32) -> (i32, i32) {
    %c0_i32 = arith.constant 0 : i32
    %c0_i32_0 = arith.constant 0 : i32
    return %arg0, %c0_i32 : i32, i32
  }
}

</mosaic_0001>

<llo_original>
// kernel: custom_mlp_forward.4
$region0: #{custom_mlp_forward.4}
  #allocation0 [shape = 'u32[]', space=smem, size = 0x4, offset = 0x4, fixed_abs, tag = 'smem constant byte address 0x4 - core index']
  #allocation1 [shape = 'u32[144,128]{1,0:T(1,128)}', space=vmem, size = 0x12000, scoped, tag = 'internal scratch']
  %s0 = inlined_call_operand.vmem [shape: f32[8,128], index: 0, kind: input, shape index: {}]
  %s1 = inlined_call_operand.vmem [shape: f32[1,128], index: 1, kind: input, shape index: {}]
  %s2 = inlined_call_operand.vmem [shape: f32[1,128], index: 2, kind: input, shape index: {}]
  %s3 = inlined_call_operand.vmem [shape: f32[1,128], index: 3, kind: input, shape index: {}]
  %s4 = inlined_call_operand.vmem [shape: f32[1,128], index: 4, kind: input, shape index: {}]
  %s5 = inlined_call_operand.vmem [shape: f32[128,128], index: 5, kind: input, shape index: {}]
  %s6 = inlined_call_operand.vmem [shape: f32[8,128], index: 6, kind: output, shape index: {0}]
  %s7 = inlined_call_operand.vmem [shape: f32[1,128], index: 7, kind: output, shape index: {1}]
  %s8 = inlined_call_operand.vmem [shape: f32[1,128], index: 8, kind: output, shape index: {2}]
  %9 = xla_tuple %s6, %s7, %s8
  %s10 = sld [smem:[#allocation0]]
  $region54: #{custom_mlp_forward.4} parent=0
    _
  %s12 = ssub.s32 1, %s10
  %s13 = scalar_select 0, %s12, %s10
  // Predicated region
  $region2: #{custom_mlp_forward.4} parent=0 // pred_check
    _
  $region3: #{custom_mlp_forward.4} parent=0 // pred_check_branch
    %15 = sbr.rel (0) target = $region5
  $region4: #{custom_mlp_forward.4} parent=0 // pred_region
    _
  $region5: #{custom_mlp_forward.4} parent=0 // pred_fallthru
    _
  // Predicated region
  $region6: #{custom_mlp_forward.4} parent=0 // pred_check
    _
  $region7: #{custom_mlp_forward.4} parent=0 // pred_check_branch
    %17 = sbr.rel (0) target = $region9
  $region8: #{custom_mlp_forward.4} parent=0 // pred_region
    _
  $region9: #{custom_mlp_forward.4} parent=0 // pred_fallthru
    _
  // Predicated region
  $region10: #{custom_mlp_forward.4} parent=0 // pred_check
    _
  $region11: #{custom_mlp_forward.4} parent=0 // pred_check_branch
    %19 = sbr.rel (0) target = $region13
  $region12: #{custom_mlp_forward.4} parent=0 // pred_region
    _
  $region13: #{custom_mlp_forward.4} parent=0 // pred_fallthru
    _
  // Predicated region
  $region14: #{custom_mlp_forward.4} parent=0 // pred_check
    _
  $region15: #{custom_mlp_forward.4} parent=0 // pred_check_branch
    %21 = sbr.rel (0) target = $region17
  $region16: #{custom_mlp_forward.4} parent=0 // pred_region
    _
  $region17: #{custom_mlp_forward.4} parent=0 // pred_fallthru
    _
  // Predicated region
  $region18: #{custom_mlp_forward.4} parent=0 // pred_check
    _
  $region19: #{custom_mlp_forward.4} parent=0 // pred_check_branch
    %23 = sbr.rel (0) target = $region21
  $region20: #{custom_mlp_forward.4} parent=0 // pred_region
    _
  $region21: #{custom_mlp_forward.4} parent=0 // pred_fallthru
    _
  // Predicated region
  $region22: #{custom_mlp_forward.4} parent=0 // pred_check
    _
  $region23: #{custom_mlp_forward.4} parent=0 // pred_check_branch
    %25 = sbr.rel (0) target = $region25
  $region24: #{custom_mlp_forward.4} parent=0 // pred_region
    _
  $region25: #{custom_mlp_forward.4} parent=0 // pred_fallthru
    _
  %p26 = scmp.eq.s32.totalorder 0, 0
  // Predicated region
  $region26: #{custom_mlp_forward.4} parent=0 // pred_check
    %p27 = pneg %p26
  $region27: #{custom_mlp_forward.4} parent=0 // pred_check_branch
    %29 = sbr.rel (%p27) target = $region29
  $region28: #{custom_mlp_forward.4} parent=0 // pred_region
    %30 = vst [vmem:[%s7] sm:$0x1] 0.0
    %31 = vst [vmem:[%s8] sm:$0x1] 0.0
  $region29: #{custom_mlp_forward.4} parent=0 // pred_fallthru
    _
  %v32 = vld [vmem:[%s1] sm:$0x1]
  %v33 = vmul.f32 %v32, 0.125
  %v34 = vld [vmem:[%s2] sm:$0x1]
  %v35 = vmul.f32 %v34, 0.125
  %v36 = vmul.f32 %v33, %v33
  %v37 = vsub.f32 %v35, %v36
  %v38 = vmax.f32 %v37, 0.0
  %v39 = vadd.f32 %v38, 1e-05
  %v40 = vrsqrt.pop %v39
  %v41 = vld [vmem:[%s0] sm:$0xff]
  %v43 = vlaneseq
  %v44 = vshrl.u32 %v43, 7
  %v45 = vsub.s32 0, %v44
  %v46 = vrot.slane %v33, %v45
  %v48 = vsub.f32 %v41, %v46
  %v49 = vld [vmem:[%s3] sm:$0x1]
  %v50 = vmul.f32 %v40, %v49
  %v52 = vlaneseq
  %v53 = vshrl.u32 %v52, 7
  %v54 = vsub.s32 0, %v53
  %v55 = vrot.slane %v50, %v54
  %v57 = vmul.f32 %v48, %v55
  %v58 = vld [vmem:[%s4] sm:$0x1]
  %v60 = vlaneseq
  %v61 = vshrl.u32 %v60, 7
  %v62 = vsub.s32 0, %v61
  %v63 = vrot.slane %v58, %v62
  %v65 = vadd.f32 %v57, %v63
  %v66 = vsub.f32 0.0, %v65
  %v67 = vmul.f32 %v66, 1.442695
  %v68 = vpow.pop %v67
  %v69 = vadd.f32 %v68, 1.0
  %v70 = vrcp.pop %v69
  %v71 = vmul.f32 %v65, %v70
  %v72 = vld [vmem:[%s5] sm:$0xff]
  %v73 = vld [vmem:[%s5 + $0x8] sm:$0xff]
  %v74 = vld [vmem:[%s5 + $0x10] sm:$0xff]
  %v75 = vld [vmem:[%s5 + $0x18] sm:$0xff]
  %v76 = vld [vmem:[%s5 + $0x20] sm:$0xff]
  %v77 = vld [vmem:[%s5 + $0x28] sm:$0xff]
  %v78 = vld [vmem:[%s5 + $0x30] sm:$0xff]
  %v79 = vld [vmem:[%s5 + $0x38] sm:$0xff]
  %v80 = vld [vmem:[%s5 + $0x40] sm:$0xff]
  %v81 = vld [vmem:[%s5 + $0x48] sm:$0xff]
  %v82 = vld [vmem:[%s5 + $0x50] sm:$0xff]
  %v83 = vld [vmem:[%s5 + $0x58] sm:$0xff]
  %v84 = vld [vmem:[%s5 + $0x60] sm:$0xff]
  %v85 = vld [vmem:[%s5 + $0x68] sm:$0xff]
  %v86 = vld [vmem:[%s5 + $0x70] sm:$0xff]
  %v87 = vld [vmem:[%s5 + $0x78] sm:$0xff]
  %88 = vmatprep.subr.mxu0 0.0
  %89 = vmatpush1.msra.mxu0 %v72
  %90 = vmatprep.subr.mxu0 0.0
  %91 = vmatpush1.msra.mxu0 %v73
  %92 = vmatprep.subr.mxu0 0.0
  %93 = vmatpush1.msra.mxu0 %v74
  %94 = vmatprep.subr.mxu0 0.0
  %95 = vmatpush1.msra.mxu0 %v75
  %96 = vmatprep.subr.mxu0 0.0
  %97 = vmatpush1.msra.mxu0 %v76
  %98 = vmatprep.subr.mxu0 0.0
  %99 = vmatpush1.msra.mxu0 %v77
  %100 = vmatprep.subr.mxu0 0.0
  %101 = vmatpush1.msra.mxu0 %v78
  %102 = vmatprep.subr.mxu0 0.0
  %103 = vmatpush1.msra.mxu0 %v79
  %104 = vmatprep.subr.mxu0 0.0
  %105 = vmatpush1.msra.mxu0 %v80
  %106 = vmatprep.subr.mxu0 0.0
  %107 = vmatpush1.msra.mxu0 %v81
  %108 = vmatprep.subr.mxu0 0.0
  %109 = vmatpush1.msra.mxu0 %v82
  %110 = vmatprep.subr.mxu0 0.0
  %111 = vmatpush1.msra.mxu0 %v83
  %112 = vmatprep.subr.mxu0 0.0
  %113 = vmatpush1.msra.mxu0 %v84
  %114 = vmatprep.subr.mxu0 0.0
  %115 = vmatpush1.msra.mxu0 %v85
  %116 = vmatprep.subr.mxu0 0.0
  %117 = vmatpush1.msra.mxu0 %v86
  %118 = vmatprep.subr.mxu0 0.0
  %119 = vmatpush1.msra.mxu0 %v87
  %120 = vmatprep.subr.mxu0 0.0
  %121 = vmatpush1.msra.mxu0 0.0
  %122 = vmatprep.subr.mxu0 0.0
  %123 = vmatpush1.msra.mxu0 0.0
  %124 = vmatprep.subr.mxu0 0.0
  %125 = vmatpush1.msra.mxu0 0.0
  %126 = vmatprep.subr.mxu0 0.0
  %127 = vmatpush1.msra.mxu0 0.0
  %128 = vmatprep.subr.mxu0 0.0
  %129 = vmatpush1.msra.mxu0 0.0
  %130 = vmatprep.subr.mxu0 0.0
  %131 = vmatpush1.msra.mxu0 0.0
  %132 = vmatprep.subr.mxu0 0.0
  %133 = vmatpush1.msra.mxu0 0.0
  %134 = vmatprep.subr.mxu0 0.0
  %135 = vmatpush1.msra.mxu0 0.0
  %136 = vmatprep.subr.mxu0 0.0
  %137 = vmatpush1.msra.mxu0 0.0
  %138 = vmatprep.subr.mxu0 0.0
  %139 = vmatpush1.msra.mxu0 0.0
  %140 = vmatprep.subr.mxu0 0.0
  %141 = vmatpush1.msra.mxu0 0.0
  %142 = vmatprep.subr.mxu0 0.0
  %143 = vmatpush1.msra.mxu0 0.0
  %144 = vmatprep.subr.mxu0 0.0
  %145 = vmatpush1.msra.mxu0 0.0
  %146 = vmatprep.subr.mxu0 0.0
  %147 = vmatpush1.msra.mxu0 0.0
  %148 = vmatprep.subr.mxu0 0.0
  %149 = vmatpush1.msra.mxu0 0.0
  %150 = vmatprep.subr.mxu0 0.0
  %151 = vmatpush1.msra.mxu0 0.0
  %152 = vmatprep.mubr.f32.mxu0 0.0
  %153 = vmatmul.mubr.f32.gmra.mrb[0].mxu0 %v71
  %v154 = vpop.f32.mrb[0].mxu0
  %v155 = vadd.f32 0.0, %v154
  %v156 = vpop.f32.mrb[0].mxu0
  %157 = vdwg.mxu0
  %158 = vst [vmem:[%s6] sm:$0xff] %v155
  %s159 = smul.u32 0, 8
  %v160 = vlaneseq
  %v161 = vshrl.u32 %v160, 7
  %v162 = vstv %s159
  %v163 = vadd.s32 %v162, %v161
  %vm164 = vcmp.lt.s32.totalorder %v163, 8
  %v165 = vsel %vm164, 1, 0
  %v166 = vcvt.s32.f32 %v165
  %v167 = vmul.f32 %v155, %v166
  %v168 = vld [vmem:[%s7] sm:$0x1]
  %v169 = vrot.slane %v167, 4
  %v170 = vadd.f32 %v167, %v169
  %v171 = vrot.slane %v170, 2
  %v172 = vadd.f32 %v170, %v171
  %v173 = vrot.slane %v172, 1
  %v174 = vadd.f32 %v172, %v173
  %v175 = vadd.f32 %v168, %v174
  %176 = vst [vmem:[%s7] sm:$0x1] %v175
  %v177 = vld [vmem:[%s8] sm:$0x1]
  %v178 = vmul.f32 %v167, %v167
  %v179 = vrot.slane %v178, 4
  %v180 = vadd.f32 %v178, %v179
  %v181 = vrot.slane %v180, 2
  %v182 = vadd.f32 %v180, %v181
  %v183 = vrot.slane %v182, 1
  %v184 = vadd.f32 %v182, %v183
  %v185 = vadd.f32 %v177, %v184
  %186 = vst [vmem:[%s8] sm:$0x1] %v185
  // Predicated region
  $region30: #{custom_mlp_forward.4} parent=0 // pred_check
    _
  $region31: #{custom_mlp_forward.4} parent=0 // pred_check_branch
    %188 = sbr.rel (0) target = $region33
  $region32: #{custom_mlp_forward.4} parent=0 // pred_region
    _
  $region33: #{custom_mlp_forward.4} parent=0 // pred_fallthru
    _
  // Predicated region
  $region34: #{custom_mlp_forward.4} parent=0 // pred_check
    _
  $region35: #{custom_mlp_forward.4} parent=0 // pred_check_branch
    %190 = sbr.rel (0) target = $region37
  $region36: #{custom_mlp_forward.4} parent=0 // pred_region
    _
  $region37: #{custom_mlp_forward.4} parent=0 // pred_fallthru
    _
  // Predicated region
  $region38: #{custom_mlp_forward.4} parent=0 // pred_check
    _
  $region39: #{custom_mlp_forward.4} parent=0 // pred_check_branch
    %192 = sbr.rel (0) target = $region41
  $region40: #{custom_mlp_forward.4} parent=0 // pred_region
    _
  $region41: #{custom_mlp_forward.4} parent=0 // pred_fallthru
    _
  // Predicated region
  $region42: #{custom_mlp_forward.4} parent=0 // pred_check
    _
  $region43: #{custom_mlp_forward.4} parent=0 // pred_check_branch
    %194 = sbr.rel (0) target = $region45
  $region44: #{custom_mlp_forward.4} parent=0 // pred_region
    _
  $region45: #{custom_mlp_forward.4} parent=0 // pred_fallthru
    _
  // Predicated region
  $region46: #{custom_mlp_forward.4} parent=0 // pred_check
    _
  $region47: #{custom_mlp_forward.4} parent=0 // pred_check_branch
    %196 = sbr.rel (0) target = $region49
  $region48: #{custom_mlp_forward.4} parent=0 // pred_region
    _
  $region49: #{custom_mlp_forward.4} parent=0 // pred_fallthru
    _
  // Predicated region
  $region50: #{custom_mlp_forward.4} parent=0 // pred_check
    _
  $region51: #{custom_mlp_forward.4} parent=0 // pred_check_branch
    %198 = sbr.rel (0) target = $region53
  $region52: #{custom_mlp_forward.4} parent=0 // pred_region
    _
  $region53: #{custom_mlp_forward.4} parent=0 // pred_fallthru
    _

// kernel: custom_mlp_forward.3
$region0: #{custom_mlp_forward.3}
  #allocation0 [shape = 'u32[]', space=smem, size = 0x4, offset = 0x4, fixed_abs, tag = 'smem constant byte address 0x4 - core index']
  #allocation1 [shape = 'u32[144,128]{1,0:T(1,128)}', space=vmem, size = 0x12000, scoped, tag = 'internal scratch']
  %s0 = inlined_call_operand.vmem [shape: f32[8,784], index: 0, kind: input, shape index: {}]
  %s1 = inlined_call_operand.vmem [shape: f32[784,128], index: 1, kind: input, shape index: {}]
  %s2 = inlined_call_operand.vmem [shape: f32[8,128], index: 2, kind: output, shape index: {0}]
  %s3 = inlined_call_operand.vmem [shape: f32[1,128], index: 3, kind: output, shape index: {1}]
  %s4 = inlined_call_operand.vmem [shape: f32[1,128], index: 4, kind: output, shape index: {2}]
  %5 = xla_tuple %s2, %s3, %s4
  %s6 = sld [smem:[#allocation0]]
  $region38: #{custom_mlp_forward.3} parent=0
    _
  %s8 = ssub.s32 1, %s6
  %s9 = scalar_select 0, %s8, %s6
  // Predicated region
  $region2: #{custom_mlp_forward.3} parent=0 // pred_check
    _
  $region3: #{custom_mlp_forward.3} parent=0 // pred_check_branch
    %11 = sbr.rel (0) target = $region5
  $region4: #{custom_mlp_forward.3} parent=0 // pred_region
    _
  $region5: #{custom_mlp_forward.3} parent=0 // pred_fallthru
    _
  // Predicated region
  $region6: #{custom_mlp_forward.3} parent=0 // pred_check
    _
  $region7: #{custom_mlp_forward.3} parent=0 // pred_check_branch
    %13 = sbr.rel (0) target = $region9
  $region8: #{custom_mlp_forward.3} parent=0 // pred_region
    _
  $region9: #{custom_mlp_forward.3} parent=0 // pred_fallthru
    _
  %p14 = scmp.eq.s32.totalorder 0, 0
  // Predicated region
  $region10: #{custom_mlp_forward.3} parent=0 // pred_check
    %p15 = pneg %p14
  $region11: #{custom_mlp_forward.3} parent=0 // pred_check_branch
    %17 = sbr.rel (%p15) target = $region13
  $region12: #{custom_mlp_forward.3} parent=0 // pred_region
    %18 = vst [vmem:[%s3] sm:$0x1] 0.0
    %19 = vst [vmem:[%s4] sm:$0x1] 0.0
  $region13: #{custom_mlp_forward.3} parent=0 // pred_fallthru
    _
  %v20 = vld [vmem:[%s0] sm:$0xff]
  %v21 = vld [vmem:[%s0 + $0x8] sm:$0xff]
  %v22 = vld [vmem:[%s0 + $0x10] sm:$0xff]
  %v23 = vld [vmem:[%s0 + $0x18] sm:$0xff]
  %v24 = vld [vmem:[%s0 + $0x20] sm:$0xff]
  %v25 = vld [vmem:[%s0 + $0x28] sm:$0xff]
  %v26 = vld [vmem:[%s0 + $0x30] sm:$0xff]
  %v27 = vld [vmem:[%s1] sm:$0xff]
  %v28 = vld [vmem:[%s1 + $0x8] sm:$0xff]
  %v29 = vld [vmem:[%s1 + $0x10] sm:$0xff]
  %v30 = vld [vmem:[%s1 + $0x18] sm:$0xff]
  %v31 = vld [vmem:[%s1 + $0x20] sm:$0xff]
  %v32 = vld [vmem:[%s1 + $0x28] sm:$0xff]
  %v33 = vld [vmem:[%s1 + $0x30] sm:$0xff]
  %v34 = vld [vmem:[%s1 + $0x38] sm:$0xff]
  %v35 = vld [vmem:[%s1 + $0x40] sm:$0xff]
  %v36 = vld [vmem:[%s1 + $0x48] sm:$0xff]
  %v37 = vld [vmem:[%s1 + $0x50] sm:$0xff]
  %v38 = vld [vmem:[%s1 + $0x58] sm:$0xff]
  %v39 = vld [vmem:[%s1 + $0x60] sm:$0xff]
  %v40 = vld [vmem:[%s1 + $0x68] sm:$0xff]
  %v41 = vld [vmem:[%s1 + $0x70] sm:$0xff]
  %v42 = vld [vmem:[%s1 + $0x78] sm:$0xff]
  %v43 = vld [vmem:[%s1 + $0x80] sm:$0xff]
  %v44 = vld [vmem:[%s1 + $0x88] sm:$0xff]
  %v45 = vld [vmem:[%s1 + $0x90] sm:$0xff]
  %v46 = vld [vmem:[%s1 + $0x98] sm:$0xff]
  %v47 = vld [vmem:[%s1 + $0xa0] sm:$0xff]
  %v48 = vld [vmem:[%s1 + $0xa8] sm:$0xff]
  %v49 = vld [vmem:[%s1 + $0xb0] sm:$0xff]
  %v50 = vld [vmem:[%s1 + $0xb8] sm:$0xff]
  %v51 = vld [vmem:[%s1 + $0xc0] sm:$0xff]
  %v52 = vld [vmem:[%s1 + $0xc8] sm:$0xff]
  %v53 = vld [vmem:[%s1 + $0xd0] sm:$0xff]
  %v54 = vld [vmem:[%s1 + $0xd8] sm:$0xff]
  %v55 = vld [vmem:[%s1 + $0xe0] sm:$0xff]
  %v56 = vld [vmem:[%s1 + $0xe8] sm:$0xff]
  %v57 = vld [vmem:[%s1 + $0xf0] sm:$0xff]
  %v58 = vld [vmem:[%s1 + $0xf8] sm:$0xff]
  %v59 = vld [vmem:[%s1 + $0x100] sm:$0xff]
  %v60 = vld [vmem:[%s1 + $0x108] sm:$0xff]
  %v61 = vld [vmem:[%s1 + $0x110] sm:$0xff]
  %v62 = vld [vmem:[%s1 + $0x118] sm:$0xff]
  %v63 = vld [vmem:[%s1 + $0x120] sm:$0xff]
  %v64 = vld [vmem:[%s1 + $0x128] sm:$0xff]
  %v65 = vld [vmem:[%s1 + $0x130] sm:$0xff]
  %v66 = vld [vmem:[%s1 + $0x138] sm:$0xff]
  %v67 = vld [vmem:[%s1 + $0x140] sm:$0xff]
  %v68 = vld [vmem:[%s1 + $0x148] sm:$0xff]
  %v69 = vld [vmem:[%s1 + $0x150] sm:$0xff]
  %v70 = vld [vmem:[%s1 + $0x158] sm:$0xff]
  %v71 = vld [vmem:[%s1 + $0x160] sm:$0xff]
  %v72 = vld [vmem:[%s1 + $0x168] sm:$0xff]
  %v73 = vld [vmem:[%s1 + $0x170] sm:$0xff]
  %v74 = vld [vmem:[%s1 + $0x178] sm:$0xff]
  %v75 = vld [vmem:[%s1 + $0x180] sm:$0xff]
  %v76 = vld [vmem:[%s1 + $0x188] sm:$0xff]
  %v77 = vld [vmem:[%s1 + $0x190] sm:$0xff]
  %v78 = vld [vmem:[%s1 + $0x198] sm:$0xff]
  %v79 = vld [vmem:[%s1 + $0x1a0] sm:$0xff]
  %v80 = vld [vmem:[%s1 + $0x1a8] sm:$0xff]
  %v81 = vld [vmem:[%s1 + $0x1b0] sm:$0xff]
  %v82 = vld [vmem:[%s1 + $0x1b8] sm:$0xff]
  %v83 = vld [vmem:[%s1 + $0x1c0] sm:$0xff]
  %v84 = vld [vmem:[%s1 + $0x1c8] sm:$0xff]
  %v85 = vld [vmem:[%s1 + $0x1d0] sm:$0xff]
  %v86 = vld [vmem:[%s1 + $0x1d8] sm:$0xff]
  %v87 = vld [vmem:[%s1 + $0x1e0] sm:$0xff]
  %v88 = vld [vmem:[%s1 + $0x1e8] sm:$0xff]
  %v89 = vld [vmem:[%s1 + $0x1f0] sm:$0xff]
  %v90 = vld [vmem:[%s1 + $0x1f8] sm:$0xff]
  %v91 = vld [vmem:[%s1 + $0x200] sm:$0xff]
  %v92 = vld [vmem:[%s1 + $0x208] sm:$0xff]
  %v93 = vld [vmem:[%s1 + $0x210] sm:$0xff]
  %v94 = vld [vmem:[%s1 + $0x218] sm:$0xff]
  %v95 = vld [vmem:[%s1 + $0x220] sm:$0xff]
  %v96 = vld [vmem:[%s1 + $0x228] sm:$0xff]
  %v97 = vld [vmem:[%s1 + $0x230] sm:$0xff]
  %v98 = vld [vmem:[%s1 + $0x238] sm:$0xff]
  %v99 = vld [vmem:[%s1 + $0x240] sm:$0xff]
  %v100 = vld [vmem:[%s1 + $0x248] sm:$0xff]
  %v101 = vld [vmem:[%s1 + $0x250] sm:$0xff]
  %v102 = vld [vmem:[%s1 + $0x258] sm:$0xff]
  %v103 = vld [vmem:[%s1 + $0x260] sm:$0xff]
  %v104 = vld [vmem:[%s1 + $0x268] sm:$0xff]
  %v105 = vld [vmem:[%s1 + $0x270] sm:$0xff]
  %v106 = vld [vmem:[%s1 + $0x278] sm:$0xff]
  %v107 = vld [vmem:[%s1 + $0x280] sm:$0xff]
  %v108 = vld [vmem:[%s1 + $0x288] sm:$0xff]
  %v109 = vld [vmem:[%s1 + $0x290] sm:$0xff]
  %v110 = vld [vmem:[%s1 + $0x298] sm:$0xff]
  %v111 = vld [vmem:[%s1 + $0x2a0] sm:$0xff]
  %v112 = vld [vmem:[%s1 + $0x2a8] sm:$0xff]
  %v113 = vld [vmem:[%s1 + $0x2b0] sm:$0xff]
  %v114 = vld [vmem:[%s1 + $0x2b8] sm:$0xff]
  %v115 = vld [vmem:[%s1 + $0x2c0] sm:$0xff]
  %v116 = vld [vmem:[%s1 + $0x2c8] sm:$0xff]
  %v117 = vld [vmem:[%s1 + $0x2d0] sm:$0xff]
  %v118 = vld [vmem:[%s1 + $0x2d8] sm:$0xff]
  %v119 = vld [vmem:[%s1 + $0x2e0] sm:$0xff]
  %v120 = vld [vmem:[%s1 + $0x2e8] sm:$0xff]
  %v121 = vld [vmem:[%s1 + $0x2f0] sm:$0xff]
  %v122 = vld [vmem:[%s1 + $0x2f8] sm:$0xff]
  %v123 = vld [vmem:[%s1 + $0x300] sm:$0xff]
  %v124 = vld [vmem:[%s1 + $0x308] sm:$0xff]
  %vm125 = vcmask 130048
  %v127 = vsel %vm125, %v26, 0
  %129 = vmatprep.subr.mxu0 0.0
  %130 = vmatpush1.msra.mxu0 %v27
  %131 = vmatprep.subr.mxu0 0.0
  %132 = vmatpush1.msra.mxu0 %v28
  %133 = vmatprep.subr.mxu0 0.0
  %134 = vmatpush1.msra.mxu0 %v29
  %135 = vmatprep.subr.mxu0 0.0
  %136 = vmatpush1.msra.mxu0 %v30
  %137 = vmatprep.subr.mxu0 0.0
  %138 = vmatpush1.msra.mxu0 %v31
  %139 = vmatprep.subr.mxu0 0.0
  %140 = vmatpush1.msra.mxu0 %v32
  %141 = vmatprep.subr.mxu0 0.0
  %142 = vmatpush1.msra.mxu0 %v33
  %143 = vmatprep.subr.mxu0 0.0
  %144 = vmatpush1.msra.mxu0 %v34
  %145 = vmatprep.subr.mxu0 0.0
  %146 = vmatpush1.msra.mxu0 %v35
  %147 = vmatprep.subr.mxu0 0.0
  %148 = vmatpush1.msra.mxu0 %v36
  %149 = vmatprep.subr.mxu0 0.0
  %150 = vmatpush1.msra.mxu0 %v37
  %151 = vmatprep.subr.mxu0 0.0
  %152 = vmatpush1.msra.mxu0 %v38
  %153 = vmatprep.subr.mxu0 0.0
  %154 = vmatpush1.msra.mxu0 %v39
  %155 = vmatprep.subr.mxu0 0.0
  %156 = vmatpush1.msra.mxu0 %v40
  %157 = vmatprep.subr.mxu0 0.0
  %158 = vmatpush1.msra.mxu0 %v41
  %159 = vmatprep.subr.mxu0 0.0
  %160 = vmatpush1.msra.mxu0 %v42
  %161 = vmatprep.subr.mxu0 0.0
  %162 = vmatpush1.msra.mxu0 %v43
  %163 = vmatprep.subr.mxu0 0.0
  %164 = vmatpush1.msra.mxu0 %v44
  %165 = vmatprep.subr.mxu0 0.0
  %166 = vmatpush1.msra.mxu0 %v45
  %167 = vmatprep.subr.mxu0 0.0
  %168 = vmatpush1.msra.mxu0 %v46
  %169 = vmatprep.subr.mxu0 0.0
  %170 = vmatpush1.msra.mxu0 %v47
  %171 = vmatprep.subr.mxu0 0.0
  %172 = vmatpush1.msra.mxu0 %v48
  %173 = vmatprep.subr.mxu0 0.0
  %174 = vmatpush1.msra.mxu0 %v49
  %175 = vmatprep.subr.mxu0 0.0
  %176 = vmatpush1.msra.mxu0 %v50
  %177 = vmatprep.subr.mxu0 0.0
  %178 = vmatpush1.msra.mxu0 %v51
  %179 = vmatprep.subr.mxu0 0.0
  %180 = vmatpush1.msra.mxu0 %v52
  %181 = vmatprep.subr.mxu0 0.0
  %182 = vmatpush1.msra.mxu0 %v53
  %183 = vmatprep.subr.mxu0 0.0
  %184 = vmatpush1.msra.mxu0 %v54
  %185 = vmatprep.subr.mxu0 0.0
  %186 = vmatpush1.msra.mxu0 %v55
  %187 = vmatprep.subr.mxu0 0.0
  %188 = vmatpush1.msra.mxu0 %v56
  %189 = vmatprep.subr.mxu0 0.0
  %190 = vmatpush1.msra.mxu0 %v57
  %191 = vmatprep.subr.mxu0 0.0
  %192 = vmatpush1.msra.mxu0 %v58
  %193 = vmatprep.mubr.f32.mxu0 %v21
  %194 = vmatmul.mubr.f32.gmra.mrb[0].mxu0 %v20
  %v195 = vpop.f32.mrb[0].mxu0
  %v196 = vadd.f32 0.0, %v195
  %v197 = vpop.f32.mrb[0].mxu0
  %198 = vdwg.mxu0
  %199 = vmatprep.subr.mxu0 0.0
  %200 = vmatpush1.msra.mxu0 %v59
  %201 = vmatprep.subr.mxu0 0.0
  %202 = vmatpush1.msra.mxu0 %v60
  %203 = vmatprep.subr.mxu0 0.0
  %204 = vmatpush1.msra.mxu0 %v61
  %205 = vmatprep.subr.mxu0 0.0
  %206 = vmatpush1.msra.mxu0 %v62
  %207 = vmatprep.subr.mxu0 0.0
  %208 = vmatpush1.msra.mxu0 %v63
  %209 = vmatprep.subr.mxu0 0.0
  %210 = vmatpush1.msra.mxu0 %v64
  %211 = vmatprep.subr.mxu0 0.0
  %212 = vmatpush1.msra.mxu0 %v65
  %213 = vmatprep.subr.mxu0 0.0
  %214 = vmatpush1.msra.mxu0 %v66
  %215 = vmatprep.subr.mxu0 0.0
  %216 = vmatpush1.msra.mxu0 %v67
  %217 = vmatprep.subr.mxu0 0.0
  %218 = vmatpush1.msra.mxu0 %v68
  %219 = vmatprep.subr.mxu0 0.0
  %220 = vmatpush1.msra.mxu0 %v69
  %221 = vmatprep.subr.mxu0 0.0
  %222 = vmatpush1.msra.mxu0 %v70
  %223 = vmatprep.subr.mxu0 0.0
  %224 = vmatpush1.msra.mxu0 %v71
  %225 = vmatprep.subr.mxu0 0.0
  %226 = vmatpush1.msra.mxu0 %v72
  %227 = vmatprep.subr.mxu0 0.0
  %228 = vmatpush1.msra.mxu0 %v73
  %229 = vmatprep.subr.mxu0 0.0
  %230 = vmatpush1.msra.mxu0 %v74
  %231 = vmatprep.subr.mxu0 0.0
  %232 = vmatpush1.msra.mxu0 %v75
  %233 = vmatprep.subr.mxu0 0.0
  %234 = vmatpush1.msra.mxu0 %v76
  %235 = vmatprep.subr.mxu0 0.0
  %236 = vmatpush1.msra.mxu0 %v77
  %237 = vmatprep.subr.mxu0 0.0
  %238 = vmatpush1.msra.mxu0 %v78
  %239 = vmatprep.subr.mxu0 0.0
  %240 = vmatpush1.msra.mxu0 %v79
  %241 = vmatprep.subr.mxu0 0.0
  %242 = vmatpush1.msra.mxu0 %v80
  %243 = vmatprep.subr.mxu0 0.0
  %244 = vmatpush1.msra.mxu0 %v81
  %245 = vmatprep.subr.mxu0 0.0
  %246 = vmatpush1.msra.mxu0 %v82
  %247 = vmatprep.subr.mxu0 0.0
  %248 = vmatpush1.msra.mxu0 %v83
  %249 = vmatprep.subr.mxu0 0.0
  %250 = vmatpush1.msra.mxu0 %v84
  %251 = vmatprep.subr.mxu0 0.0
  %252 = vmatpush1.msra.mxu0 %v85
  %253 = vmatprep.subr.mxu0 0.0
  %254 = vmatpush1.msra.mxu0 %v86
  %255 = vmatprep.subr.mxu0 0.0
  %256 = vmatpush1.msra.mxu0 %v87
  %257 = vmatprep.subr.mxu0 0.0
  %258 = vmatpush1.msra.mxu0 %v88
  %259 = vmatprep.subr.mxu0 0.0
  %260 = vmatpush1.msra.mxu0 %v89
  %261 = vmatprep.subr.mxu0 0.0
  %262 = vmatpush1.msra.mxu0 %v90
  %263 = vmatprep.mubr.f32.mxu0 %v23
  %264 = vmatmul.mubr.f32.gmra.mrb[0].mxu0 %v22
  %v265 = vpop.f32.mrb[0].mxu0
  %v266 = vadd.f32 %v196, %v265
  %v267 = vpop.f32.mrb[0].mxu0
  %268 = vdwg.mxu0
  %269 = vmatprep.subr.mxu0 0.0
  %270 = vmatpush1.msra.mxu0 %v91
  %271 = vmatprep.subr.mxu0 0.0
  %272 = vmatpush1.msra.mxu0 %v92
  %273 = vmatprep.subr.mxu0 0.0
  %274 = vmatpush1.msra.mxu0 %v93
  %275 = vmatprep.subr.mxu0 0.0
  %276 = vmatpush1.msra.mxu0 %v94
  %277 = vmatprep.subr.mxu0 0.0
  %278 = vmatpush1.msra.mxu0 %v95
  %279 = vmatprep.subr.mxu0 0.0
  %280 = vmatpush1.msra.mxu0 %v96
  %281 = vmatprep.subr.mxu0 0.0
  %282 = vmatpush1.msra.mxu0 %v97
  %283 = vmatprep.subr.mxu0 0.0
  %284 = vmatpush1.msra.mxu0 %v98
  %285 = vmatprep.subr.mxu0 0.0
  %286 = vmatpush1.msra.mxu0 %v99
  %287 = vmatprep.subr.mxu0 0.0
  %288 = vmatpush1.msra.mxu0 %v100
  %289 = vmatprep.subr.mxu0 0.0
  %290 = vmatpush1.msra.mxu0 %v101
  %291 = vmatprep.subr.mxu0 0.0
  %292 = vmatpush1.msra.mxu0 %v102
  %293 = vmatprep.subr.mxu0 0.0
  %294 = vmatpush1.msra.mxu0 %v103
  %295 = vmatprep.subr.mxu0 0.0
  %296 = vmatpush1.msra.mxu0 %v104
  %297 = vmatprep.subr.mxu0 0.0
  %298 = vmatpush1.msra.mxu0 %v105
  %299 = vmatprep.subr.mxu0 0.0
  %300 = vmatpush1.msra.mxu0 %v106
  %301 = vmatprep.subr.mxu0 0.0
  %302 = vmatpush1.msra.mxu0 %v107
  %303 = vmatprep.subr.mxu0 0.0
  %304 = vmatpush1.msra.mxu0 %v108
  %305 = vmatprep.subr.mxu0 0.0
  %306 = vmatpush1.msra.mxu0 %v109
  %307 = vmatprep.subr.mxu0 0.0
  %308 = vmatpush1.msra.mxu0 %v110
  %309 = vmatprep.subr.mxu0 0.0
  %310 = vmatpush1.msra.mxu0 %v111
  %311 = vmatprep.subr.mxu0 0.0
  %312 = vmatpush1.msra.mxu0 %v112
  %313 = vmatprep.subr.mxu0 0.0
  %314 = vmatpush1.msra.mxu0 %v113
  %315 = vmatprep.subr.mxu0 0.0
  %316 = vmatpush1.msra.mxu0 %v114
  %317 = vmatprep.subr.mxu0 0.0
  %318 = vmatpush1.msra.mxu0 %v115
  %319 = vmatprep.subr.mxu0 0.0
  %320 = vmatpush1.msra.mxu0 %v116
  %321 = vmatprep.subr.mxu0 0.0
  %322 = vmatpush1.msra.mxu0 %v117
  %323 = vmatprep.subr.mxu0 0.0
  %324 = vmatpush1.msra.mxu0 %v118
  %325 = vmatprep.subr.mxu0 0.0
  %326 = vmatpush1.msra.mxu0 %v119
  %327 = vmatprep.subr.mxu0 0.0
  %328 = vmatpush1.msra.mxu0 %v120
  %329 = vmatprep.subr.mxu0 0.0
  %330 = vmatpush1.msra.mxu0 %v121
  %331 = vmatprep.subr.mxu0 0.0
  %332 = vmatpush1.msra.mxu0 %v122
  %333 = vmatprep.mubr.f32.mxu0 %v25
  %334 = vmatmul.mubr.f32.gmra.mrb[0].mxu0 %v24
  %v335 = vpop.f32.mrb[0].mxu0
  %v336 = vadd.f32 %v266, %v335
  %v337 = vpop.f32.mrb[0].mxu0
  %338 = vdwg.mxu0
  %339 = vmatprep.subr.mxu0 0.0
  %340 = vmatpush1.msra.mxu0 %v123
  %341 = vmatprep.subr.mxu0 0.0
  %342 = vmatpush1.msra.mxu0 %v124
  %343 = vmatprep.subr.mxu0 0.0
  %344 = vmatpush1.msra.mxu0 0.0
  %345 = vmatprep.subr.mxu0 0.0
  %346 = vmatpush1.msra.mxu0 0.0
  %347 = vmatprep.subr.mxu0 0.0
  %348 = vmatpush1.msra.mxu0 0.0
  %349 = vmatprep.subr.mxu0 0.0
  %350 = vmatpush1.msra.mxu0 0.0
  %351 = vmatprep.subr.mxu0 0.0
  %352 = vmatpush1.msra.mxu0 0.0
  %353 = vmatprep.subr.mxu0 0.0
  %354 = vmatpush1.msra.mxu0 0.0
  %355 = vmatprep.subr.mxu0 0.0
  %356 = vmatpush1.msra.mxu0 0.0
  %357 = vmatprep.subr.mxu0 0.0
  %358 = vmatpush1.msra.mxu0 0.0
  %359 = vmatprep.subr.mxu0 0.0
  %360 = vmatpush1.msra.mxu0 0.0
  %361 = vmatprep.subr.mxu0 0.0
  %362 = vmatpush1.msra.mxu0 0.0
  %363 = vmatprep.subr.mxu0 0.0
  %364 = vmatpush1.msra.mxu0 0.0
  %365 = vmatprep.subr.mxu0 0.0
  %366 = vmatpush1.msra.mxu0 0.0
  %367 = vmatprep.subr.mxu0 0.0
  %368 = vmatpush1.msra.mxu0 0.0
  %369 = vmatprep.subr.mxu0 0.0
  %370 = vmatpush1.msra.mxu0 0.0
  %371 = vmatprep.subr.mxu0 0.0
  %372 = vmatpush1.msra.mxu0 0.0
  %373 = vmatprep.subr.mxu0 0.0
  %374 = vmatpush1.msra.mxu0 0.0
  %375 = vmatprep.subr.mxu0 0.0
  %376 = vmatpush1.msra.mxu0 0.0
  %377 = vmatprep.subr.mxu0 0.0
  %378 = vmatpush1.msra.mxu0 0.0
  %379 = vmatprep.subr.mxu0 0.0
  %380 = vmatpush1.msra.mxu0 0.0
  %381 = vmatprep.subr.mxu0 0.0
  %382 = vmatpush1.msra.mxu0 0.0
  %383 = vmatprep.subr.mxu0 0.0
  %384 = vmatpush1.msra.mxu0 0.0
  %385 = vmatprep.subr.mxu0 0.0
  %386 = vmatpush1.msra.mxu0 0.0
  %387 = vmatprep.subr.mxu0 0.0
  %388 = vmatpush1.msra.mxu0 0.0
  %389 = vmatprep.subr.mxu0 0.0
  %390 = vmatpush1.msra.mxu0 0.0
  %391 = vmatprep.subr.mxu0 0.0
  %392 = vmatpush1.msra.mxu0 0.0
  %393 = vmatprep.subr.mxu0 0.0
  %394 = vmatpush1.msra.mxu0 0.0
  %395 = vmatprep.subr.mxu0 0.0
  %396 = vmatpush1.msra.mxu0 0.0
  %397 = vmatprep.subr.mxu0 0.0
  %398 = vmatpush1.msra.mxu0 0.0
  %399 = vmatprep.subr.mxu0 0.0
  %400 = vmatpush1.msra.mxu0 0.0
  %401 = vmatprep.subr.mxu0 0.0
  %402 = vmatpush1.msra.mxu0 0.0
  %403 = vmatprep.mubr.f32.mxu0 0.0
  %404 = vmatmul.mubr.f32.gmra.mrb[0].mxu0 %v127
  %v405 = vpop.f32.mrb[0].mxu0
  %v406 = vadd.f32 %v336, %v405
  %v407 = vpop.f32.mrb[0].mxu0
  %408 = vdwg.mxu0
  %409 = vst [vmem:[%s2] sm:$0xff] %v406
  %v410 = vld [vmem:[%s3] sm:$0x1]
  %v411 = vrot.slane %v406, 4
  %v412 = vadd.f32 %v406, %v411
  %v413 = vrot.slane %v412, 2
  %v414 = vadd.f32 %v412, %v413
  %v415 = vrot.slane %v414, 1
  %v416 = vadd.f32 %v414, %v415
  %v417 = vadd.f32 %v410, %v416
  %418 = vst [vmem:[%s3] sm:$0x1] %v417
  %v419 = vld [vmem:[%s4] sm:$0x1]
  %v420 = vmul.f32 %v406, %v406
  %v421 = vrot.slane %v420, 4
  %v422 = vadd.f32 %v420, %v421
  %v423 = vrot.slane %v422, 2
  %v424 = vadd.f32 %v422, %v423
  %v425 = vrot.slane %v424, 1
  %v426 = vadd.f32 %v424, %v425
  %v427 = vadd.f32 %v419, %v426
  %428 = vst [vmem:[%s4] sm:$0x1] %v427
  // Predicated region
  $region14: #{custom_mlp_forward.3} parent=0 // pred_check
    _
  $region15: #{custom_mlp_forward.3} parent=0 // pred_check_branch
    %430 = sbr.rel (0) target = $region17
  $region16: #{custom_mlp_forward.3} parent=0 // pred_region
    _
  $region17: #{custom_mlp_forward.3} parent=0 // pred_fallthru
    _
  // Predicated region
  $region18: #{custom_mlp_forward.3} parent=0 // pred_check
    _
  $region19: #{custom_mlp_forward.3} parent=0 // pred_check_branch
    %432 = sbr.rel (0) target = $region21
  $region20: #{custom_mlp_forward.3} parent=0 // pred_region
    _
  $region21: #{custom_mlp_forward.3} parent=0 // pred_fallthru
    _
  // Predicated region
  $region22: #{custom_mlp_forward.3} parent=0 // pred_check
    _
  $region23: #{custom_mlp_forward.3} parent=0 // pred_check_branch
    %434 = sbr.rel (0) target = $region25
  $region24: #{custom_mlp_forward.3} parent=0 // pred_region
    _
  $region25: #{custom_mlp_forward.3} parent=0 // pred_fallthru
    _
  // Predicated region
  $region26: #{custom_mlp_forward.3} parent=0 // pred_check
    _
  $region27: #{custom_mlp_forward.3} parent=0 // pred_check_branch
    %436 = sbr.rel (0) target = $region29
  $region28: #{custom_mlp_forward.3} parent=0 // pred_region
    _
  $region29: #{custom_mlp_forward.3} parent=0 // pred_fallthru
    _
  // Predicated region
  $region30: #{custom_mlp_forward.3} parent=0 // pred_check
    _
  $region31: #{custom_mlp_forward.3} parent=0 // pred_check_branch
    %438 = sbr.rel (0) target = $region33
  $region32: #{custom_mlp_forward.3} parent=0 // pred_region
    _
  $region33: #{custom_mlp_forward.3} parent=0 // pred_fallthru
    _
  // Predicated region
  $region34: #{custom_mlp_forward.3} parent=0 // pred_check
    _
  $region35: #{custom_mlp_forward.3} parent=0 // pred_check_branch
    %440 = sbr.rel (0) target = $region37
  $region36: #{custom_mlp_forward.3} parent=0 // pred_region
    _
  $region37: #{custom_mlp_forward.3} parent=0 // pred_fallthru
    _

// kernel: custom_mlp_forward.5
$region0: #{custom_mlp_forward.5}
  #allocation0 [shape = 'u32[]', space=smem, size = 0x4, offset = 0x4, fixed_abs, tag = 'smem constant byte address 0x4 - core index']
  #allocation1 [shape = 'u32[144,128]{1,0:T(1,128)}', space=vmem, size = 0x12000, scoped, tag = 'internal scratch']
  %s0 = inlined_call_operand.vmem [shape: f32[8,128], index: 0, kind: input, shape index: {}]
  %s1 = inlined_call_operand.vmem [shape: f32[1,128], index: 1, kind: input, shape index: {}]
  %s2 = inlined_call_operand.vmem [shape: f32[1,128], index: 2, kind: input, shape index: {}]
  %s3 = inlined_call_operand.vmem [shape: f32[1,128], index: 3, kind: input, shape index: {}]
  %s4 = inlined_call_operand.vmem [shape: f32[1,128], index: 4, kind: input, shape index: {}]
  %s5 = inlined_call_operand.vmem [shape: f32[128,128], index: 5, kind: input, shape index: {}]
  %s6 = inlined_call_operand.vmem [shape: f32[1,128], index: 6, kind: input, shape index: {}]
  %s7 = inlined_call_operand.vmem [shape: f32[128,128], index: 7, kind: input, shape index: {}]
  %s8 = inlined_call_operand.vmem [shape: f32[1,128], index: 8, kind: input, shape index: {}]
  %s9 = inlined_call_operand.hbm [shape: f32[8,128], index: 9, kind: output, shape index: {}]
  %s10 = sld [smem:[#allocation0]]
  $region46: #{custom_mlp_forward.5} parent=0
    _
  %s12 = ssub.s32 1, %s10
  %s13 = scalar_select 0, %s12, %s10
  $region1: #{custom_mlp_forward.5} parent=0
    #allocation2 [shape = 'u8[4096]{0}', space=vmem, size = 0x1000, scoped, tag = 'output window, operand 0, single buffered']
    #allocation3 [shape = 's32[1]{0}', space=sflag, size = 0x4, scoped, tag = 'scoped memory for custom_mlp_forward.5']
    %14 = vsyncpa [#allocation3], 0
    // Predicated region
    $region2: #{custom_mlp_forward.5} parent=1 // pred_check
      _
    $region3: #{custom_mlp_forward.5} parent=1 // pred_check_branch
      %16 = sbr.rel (0) target = $region5
    $region4: #{custom_mlp_forward.5} parent=1 // pred_region
      _
    $region5: #{custom_mlp_forward.5} parent=1 // pred_fallthru
      _
    // Predicated region
    $region6: #{custom_mlp_forward.5} parent=1 // pred_check
      _
    $region7: #{custom_mlp_forward.5} parent=1 // pred_check_branch
      %18 = sbr.rel (0) target = $region9
    $region8: #{custom_mlp_forward.5} parent=1 // pred_region
      _
    $region9: #{custom_mlp_forward.5} parent=1 // pred_fallthru
      _
    // Predicated region
    $region10: #{custom_mlp_forward.5} parent=1 // pred_check
      _
    $region11: #{custom_mlp_forward.5} parent=1 // pred_check_branch
      %20 = sbr.rel (0) target = $region13
    $region12: #{custom_mlp_forward.5} parent=1 // pred_region
      _
    $region13: #{custom_mlp_forward.5} parent=1 // pred_fallthru
      _
    // Predicated region
    $region14: #{custom_mlp_forward.5} parent=1 // pred_check
      _
    $region15: #{custom_mlp_forward.5} parent=1 // pred_check_branch
      %22 = sbr.rel (0) target = $region17
    $region16: #{custom_mlp_forward.5} parent=1 // pred_region
      _
    $region17: #{custom_mlp_forward.5} parent=1 // pred_fallthru
      _
    // Predicated region
    $region18: #{custom_mlp_forward.5} parent=1 // pred_check
      _
    $region19: #{custom_mlp_forward.5} parent=1 // pred_check_branch
      %24 = sbr.rel (0) target = $region21
    $region20: #{custom_mlp_forward.5} parent=1 // pred_region
      _
    $region21: #{custom_mlp_forward.5} parent=1 // pred_fallthru
      _
    // Predicated region
    $region22: #{custom_mlp_forward.5} parent=1 // pred_check
      _
    $region23: #{custom_mlp_forward.5} parent=1 // pred_check_branch
      %26 = sbr.rel (0) target = $region25
    $region24: #{custom_mlp_forward.5} parent=1 // pred_region
      _
    $region25: #{custom_mlp_forward.5} parent=1 // pred_fallthru
      _
    // Predicated region
    $region26: #{custom_mlp_forward.5} parent=1 // pred_check
      _
    $region27: #{custom_mlp_forward.5} parent=1 // pred_check_branch
      %28 = sbr.rel (0) target = $region29
    $region28: #{custom_mlp_forward.5} parent=1 // pred_region
      _
    $region29: #{custom_mlp_forward.5} parent=1 // pred_fallthru
      _
    // Predicated region
    $region30: #{custom_mlp_forward.5} parent=1 // pred_check
      _
    $region31: #{custom_mlp_forward.5} parent=1 // pred_check_branch
      %30 = sbr.rel (0) target = $region33
    $region32: #{custom_mlp_forward.5} parent=1 // pred_region
      _
    $region33: #{custom_mlp_forward.5} parent=1 // pred_fallthru
      _
    // Predicated region
    $region34: #{custom_mlp_forward.5} parent=1 // pred_check
      _
    $region35: #{custom_mlp_forward.5} parent=1 // pred_check_branch
      %32 = sbr.rel (0) target = $region37
    $region36: #{custom_mlp_forward.5} parent=1 // pred_region
      _
    $region37: #{custom_mlp_forward.5} parent=1 // pred_fallthru
      _
    %v33 = vld [vmem:[%s1] sm:$0x1]
    %v34 = vmul.f32 %v33, 0.125
    %v35 = vld [vmem:[%s2] sm:$0x1]
    %v36 = vmul.f32 %v35, 0.125
    %v37 = vmul.f32 %v34, %v34
    %v38 = vsub.f32 %v36, %v37
    %v39 = vmax.f32 %v38, 0.0
    %v40 = vadd.f32 %v39, 1e-05
    %v41 = vrsqrt.pop %v40
    %v42 = vld [vmem:[%s0] sm:$0xff]
    %v44 = vlaneseq
    %v45 = vshrl.u32 %v44, 7
    %v46 = vsub.s32 0, %v45
    %v47 = vrot.slane %v34, %v46
    %v49 = vsub.f32 %v42, %v47
    %v50 = vld [vmem:[%s3] sm:$0x1]
    %v51 = vmul.f32 %v41, %v50
    %v53 = vlaneseq
    %v54 = vshrl.u32 %v53, 7
    %v55 = vsub.s32 0, %v54
    %v56 = vrot.slane %v51, %v55
    %v58 = vmul.f32 %v49, %v56
    %v59 = vld [vmem:[%s4] sm:$0x1]
    %v61 = vlaneseq
    %v62 = vshrl.u32 %v61, 7
    %v63 = vsub.s32 0, %v62
    %v64 = vrot.slane %v59, %v63
    %v66 = vadd.f32 %v58, %v64
    %v67 = vld [vmem:[%s5] sm:$0xff]
    %v68 = vld [vmem:[%s5 + $0x8] sm:$0xff]
    %v69 = vld [vmem:[%s5 + $0x10] sm:$0xff]
    %v70 = vld [vmem:[%s5 + $0x18] sm:$0xff]
    %v71 = vld [vmem:[%s5 + $0x20] sm:$0xff]
    %v72 = vld [vmem:[%s5 + $0x28] sm:$0xff]
    %v73 = vld [vmem:[%s5 + $0x30] sm:$0xff]
    %v74 = vld [vmem:[%s5 + $0x38] sm:$0xff]
    %v75 = vld [vmem:[%s5 + $0x40] sm:$0xff]
    %v76 = vld [vmem:[%s5 + $0x48] sm:$0xff]
    %v77 = vld [vmem:[%s5 + $0x50] sm:$0xff]
    %v78 = vld [vmem:[%s5 + $0x58] sm:$0xff]
    %v79 = vld [vmem:[%s5 + $0x60] sm:$0xff]
    %v80 = vld [vmem:[%s5 + $0x68] sm:$0xff]
    %v81 = vld [vmem:[%s5 + $0x70] sm:$0xff]
    %v82 = vld [vmem:[%s5 + $0x78] sm:$0xff]
    %v83 = vld [vmem:[%s6] sm:$0x1]
    %v85 = vlaneseq
    %v86 = vshrl.u32 %v85, 7
    %v87 = vsub.s32 0, %v86
    %v88 = vrot.slane %v83, %v87
    %90 = vmatprep.subr.mxu0 0.0
    %91 = vmatpush1.msra.mxu0 %v67
    %92 = vmatprep.subr.mxu0 0.0
    %93 = vmatpush1.msra.mxu0 %v68
    %94 = vmatprep.subr.mxu0 0.0
    %95 = vmatpush1.msra.mxu0 %v69
    %96 = vmatprep.subr.mxu0 0.0
    %97 = vmatpush1.msra.mxu0 %v70
    %98 = vmatprep.subr.mxu0 0.0
    %99 = vmatpush1.msra.mxu0 %v71
    %100 = vmatprep.subr.mxu0 0.0
    %101 = vmatpush1.msra.mxu0 %v72
    %102 = vmatprep.subr.mxu0 0.0
    %103 = vmatpush1.msra.mxu0 %v73
    %104 = vmatprep.subr.mxu0 0.0
    %105 = vmatpush1.msra.mxu0 %v74
    %106 = vmatprep.subr.mxu0 0.0
    %107 = vmatpush1.msra.mxu0 %v75
    %108 = vmatprep.subr.mxu0 0.0
    %109 = vmatpush1.msra.mxu0 %v76
    %110 = vmatprep.subr.mxu0 0.0
    %111 = vmatpush1.msra.mxu0 %v77
    %112 = vmatprep.subr.mxu0 0.0
    %113 = vmatpush1.msra.mxu0 %v78
    %114 = vmatprep.subr.mxu0 0.0
    %115 = vmatpush1.msra.mxu0 %v79
    %116 = vmatprep.subr.mxu0 0.0
    %117 = vmatpush1.msra.mxu0 %v80
    %118 = vmatprep.subr.mxu0 0.0
    %119 = vmatpush1.msra.mxu0 %v81
    %120 = vmatprep.subr.mxu0 0.0
    %121 = vmatpush1.msra.mxu0 %v82
    %122 = vmatprep.subr.mxu0 0.0
    %123 = vmatpush1.msra.mxu0 0.0
    %124 = vmatprep.subr.mxu0 0.0
    %125 = vmatpush1.msra.mxu0 0.0
    %126 = vmatprep.subr.mxu0 0.0
    %127 = vmatpush1.msra.mxu0 0.0
    %128 = vmatprep.subr.mxu0 0.0
    %129 = vmatpush1.msra.mxu0 0.0
    %130 = vmatprep.subr.mxu0 0.0
    %131 = vmatpush1.msra.mxu0 0.0
    %132 = vmatprep.subr.mxu0 0.0
    %133 = vmatpush1.msra.mxu0 0.0
    %134 = vmatprep.subr.mxu0 0.0
    %135 = vmatpush1.msra.mxu0 0.0
    %136 = vmatprep.subr.mxu0 0.0
    %137 = vmatpush1.msra.mxu0 0.0
    %138 = vmatprep.subr.mxu0 0.0
    %139 = vmatpush1.msra.mxu0 0.0
    %140 = vmatprep.subr.mxu0 0.0
    %141 = vmatpush1.msra.mxu0 0.0
    %142 = vmatprep.subr.mxu0 0.0
    %143 = vmatpush1.msra.mxu0 0.0
    %144 = vmatprep.subr.mxu0 0.0
    %145 = vmatpush1.msra.mxu0 0.0
    %146 = vmatprep.subr.mxu0 0.0
    %147 = vmatpush1.msra.mxu0 0.0
    %148 = vmatprep.subr.mxu0 0.0
    %149 = vmatpush1.msra.mxu0 0.0
    %150 = vmatprep.subr.mxu0 0.0
    %151 = vmatpush1.msra.mxu0 0.0
    %152 = vmatprep.subr.mxu0 0.0
    %153 = vmatpush1.msra.mxu0 0.0
    %154 = vmatprep.mubr.f32.mxu0 0.0
    %155 = vmatmul.mubr.f32.gmra.mrb[0].mxu0 %v66
    %v156 = vpop.f32.mrb[0].mxu0
    %v157 = vadd.f32 %v88, %v156
    %v158 = vpop.f32.mrb[0].mxu0
    %159 = vdwg.mxu0
    %v160 = vsub.f32 0.0, %v157
    %v161 = vmul.f32 %v160, 1.442695
    %v162 = vpow.pop %v161
    %v163 = vadd.f32 %v162, 1.0
    %v164 = vrcp.pop %v163
    %v165 = vmul.f32 %v157, %v164
    %v166 = vld [vmem:[%s7] sm:$0xff]
    %v167 = vld [vmem:[%s7 + $0x8] sm:$0xff]
    %v168 = vld [vmem:[%s7 + $0x10] sm:$0xff]
    %v169 = vld [vmem:[%s7 + $0x18] sm:$0xff]
    %v170 = vld [vmem:[%s7 + $0x20] sm:$0xff]
    %v171 = vld [vmem:[%s7 + $0x28] sm:$0xff]
    %v172 = vld [vmem:[%s7 + $0x30] sm:$0xff]
    %v173 = vld [vmem:[%s7 + $0x38] sm:$0xff]
    %v174 = vld [vmem:[%s7 + $0x40] sm:$0xff]
    %v175 = vld [vmem:[%s7 + $0x48] sm:$0xff]
    %v176 = vld [vmem:[%s7 + $0x50] sm:$0xff]
    %v177 = vld [vmem:[%s7 + $0x58] sm:$0xff]
    %v178 = vld [vmem:[%s7 + $0x60] sm:$0xff]
    %v179 = vld [vmem:[%s7 + $0x68] sm:$0xff]
    %v180 = vld [vmem:[%s7 + $0x70] sm:$0xff]
    %v181 = vld [vmem:[%s7 + $0x78] sm:$0xff]
    %v182 = vld [vmem:[%s8] sm:$0x1]
    %v184 = vlaneseq
    %v185 = vshrl.u32 %v184, 7
    %v186 = vsub.s32 0, %v185
    %v187 = vrot.slane %v182, %v186
    %189 = vmatprep.subr.mxu0 0.0
    %190 = vmatpush1.msra.mxu0 %v166
    %191 = vmatprep.subr.mxu0 0.0
    %192 = vmatpush1.msra.mxu0 %v167
    %193 = vmatprep.subr.mxu0 0.0
    %194 = vmatpush1.msra.mxu0 %v168
    %195 = vmatprep.subr.mxu0 0.0
    %196 = vmatpush1.msra.mxu0 %v169
    %197 = vmatprep.subr.mxu0 0.0
    %198 = vmatpush1.msra.mxu0 %v170
    %199 = vmatprep.subr.mxu0 0.0
    %200 = vmatpush1.msra.mxu0 %v171
    %201 = vmatprep.subr.mxu0 0.0
    %202 = vmatpush1.msra.mxu0 %v172
    %203 = vmatprep.subr.mxu0 0.0
    %204 = vmatpush1.msra.mxu0 %v173
    %205 = vmatprep.subr.mxu0 0.0
    %206 = vmatpush1.msra.mxu0 %v174
    %207 = vmatprep.subr.mxu0 0.0
    %208 = vmatpush1.msra.mxu0 %v175
    %209 = vmatprep.subr.mxu0 0.0
    %210 = vmatpush1.msra.mxu0 %v176
    %211 = vmatprep.subr.mxu0 0.0
    %212 = vmatpush1.msra.mxu0 %v177
    %213 = vmatprep.subr.mxu0 0.0
    %214 = vmatpush1.msra.mxu0 %v178
    %215 = vmatprep.subr.mxu0 0.0
    %216 = vmatpush1.msra.mxu0 %v179
    %217 = vmatprep.subr.mxu0 0.0
    %218 = vmatpush1.msra.mxu0 %v180
    %219 = vmatprep.subr.mxu0 0.0
    %220 = vmatpush1.msra.mxu0 %v181
    %221 = vmatprep.subr.mxu0 0.0
    %222 = vmatpush1.msra.mxu0 0.0
    %223 = vmatprep.subr.mxu0 0.0
    %224 = vmatpush1.msra.mxu0 0.0
    %225 = vmatprep.subr.mxu0 0.0
    %226 = vmatpush1.msra.mxu0 0.0
    %227 = vmatprep.subr.mxu0 0.0
    %228 = vmatpush1.msra.mxu0 0.0
    %229 = vmatprep.subr.mxu0 0.0
    %230 = vmatpush1.msra.mxu0 0.0
    %231 = vmatprep.subr.mxu0 0.0
    %232 = vmatpush1.msra.mxu0 0.0
    %233 = vmatprep.subr.mxu0 0.0
    %234 = vmatpush1.msra.mxu0 0.0
    %235 = vmatprep.subr.mxu0 0.0
    %236 = vmatpush1.msra.mxu0 0.0
    %237 = vmatprep.subr.mxu0 0.0
    %238 = vmatpush1.msra.mxu0 0.0
    %239 = vmatprep.subr.mxu0 0.0
    %240 = vmatpush1.msra.mxu0 0.0
    %241 = vmatprep.subr.mxu0 0.0
    %242 = vmatpush1.msra.mxu0 0.0
    %243 = vmatprep.subr.mxu0 0.0
    %244 = vmatpush1.msra.mxu0 0.0
    %245 = vmatprep.subr.mxu0 0.0
    %246 = vmatpush1.msra.mxu0 0.0
    %247 = vmatprep.subr.mxu0 0.0
    %248 = vmatpush1.msra.mxu0 0.0
    %249 = vmatprep.subr.mxu0 0.0
    %250 = vmatpush1.msra.mxu0 0.0
    %251 = vmatprep.subr.mxu0 0.0
    %252 = vmatpush1.msra.mxu0 0.0
    %253 = vmatprep.mubr.f32.mxu0 0.0
    %254 = vmatmul.mubr.f32.gmra.mrb[0].mxu0 %v165
    %v255 = vpop.f32.mrb[0].mxu0
    %v256 = vadd.f32 %v187, %v255
    %v257 = vpop.f32.mrb[0].mxu0
    %258 = vdwg.mxu0
    %v259 = vsub.f32 0.0, %v256
    %v260 = vmul.f32 %v259, 1.442695
    %v261 = vpow.pop %v260
    %v262 = vadd.f32 %v261, 1.0
    %v263 = vrcp.pop %v262
    %v264 = vmul.f32 %v256, %v263
    %v265 = vlaneseq
    %v266 = vand.u32 %v265, 127
    %vm267 = vcmp.lt.s32.totalorder %v266, 10
    %v268 = vsel %vm267, %v264, -1e+30
    %269 = vmax.xlane.f32.xlu0 %v268
    %v270 = vpop.xlane.xlu0 %269
    %v271 = vsub.f32 %v268, %v270
    %v272 = vmul.f32 %v271, 1.442695
    %v273 = vpow.pop %v272
    %274 = vadd.xlane.f32.xlu0 %v273
    %v275 = vpop.xlane.xlu0 %274
    %v276 = vlog2.pop %v275
    %v277 = vmul.f32 %v276, 0.6931472
    %v278 = vsub.f32 %v271, %v277
    %279 = vst [vmem:[#allocation2] sm:$0xff] %v278
    // Predicated region
    $region38: #{custom_mlp_forward.5} parent=1 // pred_check
      _
    $region39: #{custom_mlp_forward.5} parent=1 // pred_check_branch
      %281 = sbr.rel (0) target = $region41
    $region40: #{custom_mlp_forward.5} parent=1 // pred_region
      %s283 = ssub.s32 128, 128
      %284 = vsyncadd [#allocation3], %s283
      %s286 = sshll.u32 [#allocation2], 4
      %s287 = int_to_ptr.vmem [resolvable:$true] %s286
      %289 = dma.vmem_to_hbm [thread:$0]  %s287, 128, %s9, [#allocation3]
    $region41: #{custom_mlp_forward.5} parent=1 // pred_fallthru
      _
    // Predicated region
    $region42: #{custom_mlp_forward.5} parent=1 // pred_check
      _
    $region43: #{custom_mlp_forward.5} parent=1 // pred_check_branch
      %291 = sbr.rel (0) target = $region45
    $region44: #{custom_mlp_forward.5} parent=1 // pred_region
      %292 = dma.done [#allocation3], 128
    $region45: #{custom_mlp_forward.5} parent=1 // pred_fallthru
      _
    %293 = vsyncpa [#allocation3], 1

</llo_original>
